<compile_context>
chip_gen: v6e
topology: v6e:2x2x1
jax: 0.10.0
libtpu: 0.0.40
codegen_flags: <defaults>
</compile_context>

<pallas_src>
import functools

import jax
import jax.numpy as jnp
from jax import lax
from jax.experimental import pallas as pl
from jax.experimental.pallas import tpu as pltpu


def _bottleneck_kernel(x_ref, halo_ref, w1_ref, b1_ref, w2_ref, b2_ref,
                       w3_ref, b3_ref, o_ref, o1_buf):
    # x_ref   : (1, TH, W, Cin)   row tile of the input image
    # halo_ref: (1, 2,  W, Cin)   row above / row below this tile (zeros at edges)
    # w1_ref  : (Cin, P)          conv1 weight (BN1 scale folded), compute dtype
    # w2_ref  : (9P, P) fused-K   or (3, 3P, P) per-kh, BN2 folded
    # w3_ref  : (P, 4P)           conv3 weight (BN3 scale folded)
    # b*_ref  : (1, C) f32        BN biases
    # o1_buf  : (TH+2, W, P)      VMEM scratch holding relu(bn1(conv1)) rows
    _, TH, W, Cin = x_ref.shape
    P = w1_ref.shape[1]
    cdt = w1_ref.dtype                       # MXU input dtype (f32 or bf16)

    i = pl.program_id(1)
    nt = pl.num_programs(1)

    # ---- conv1 (1x1) + bn1 + relu ------------------------------------------
    # Tile body rows -> o1_buf[1:TH+1].
    xb = x_ref[0].reshape(TH * W, Cin).astype(cdt)
    ob = jnp.dot(xb, w1_ref[...], preferred_element_type=jnp.float32)
    ob = jnp.maximum(ob + b1_ref[...], 0.0)
    o1_buf[1:TH + 1] = ob.reshape(TH, W, P).astype(cdt)

    # Halo rows (row above / below the tile) -> o1_buf[0] / o1_buf[TH+1].
    # conv2's zero padding applies to o1: at the image top/bottom these rows
    # must be exactly zero (NOT relu(bn1(conv1(0))) = relu(b1)).
    xh = halo_ref[0].reshape(2 * W, Cin).astype(cdt)
    oh = jnp.dot(xh, w1_ref[...], preferred_element_type=jnp.float32)
    oh = jnp.maximum(oh + b1_ref[...], 0.0).reshape(2, W, P)
    keep_top = jnp.where(i == 0, 0.0, 1.0)
    keep_bot = jnp.where(i == nt - 1, 0.0, 1.0)
    o1_buf[0:1] = (oh[0:1] * keep_top).astype(cdt)
    o1_buf[TH + 1:TH + 2] = (oh[1:2] * keep_bot).astype(cdt)

    # ---- conv2 (3x3, stride 1, pad 1) + bn2 + relu ---------------------------
    o1 = o1_buf[...]                                        # (TH+2, W, P)
    # W shifts via XLU roll; zero the wrapped edge columns with a tiny mask.
    col = lax.broadcasted_iota(jnp.int32, (1, W, 1), 1)
    lmask = (col > 0).astype(cdt)
    rmask = (col < W - 1).astype(cdt)
    left = pltpu.roll(o1, shift=1, axis=1) * lmask          # value from col w-1
    right = pltpu.roll(o1, shift=W - 1, axis=1) * rmask     # value from col w+1
    win = jnp.concatenate([left, o1, right], axis=-1)       # (TH+2, W, 3P), kw-major

    if len(w2_ref.shape) == 2:
        # Fused-K path: K = 9P, single MXU matmul (fills 256-deep MXU for P<=128).
        band = jnp.concatenate([win[0:TH], win[1:TH + 1], win[2:TH + 2]],
                               axis=-1).reshape(TH * W, 9 * P)
        acc = jnp.dot(band, w2_ref[...], preferred_element_type=jnp.float32)
    else:
        # Per-kh path for large P: 3 accumulating matmuls, K = 3P each.
        acc = jnp.dot(win[0:TH].reshape(TH * W, 3 * P), w2_ref[0],
                      preferred_element_type=jnp.float32)
        for kh in range(1, 3):                               # static unroll
            acc = acc + jnp.dot(win[kh:kh + TH].reshape(TH * W, 3 * P),
                                w2_ref[kh], preferred_element_type=jnp.float32)
    o2 = jnp.maximum(acc + b2_ref[...], 0.0).astype(cdt)     # (TH*W, P)

    # ---- conv3 (1x1) + bn3 + residual add + relu -----------------------------
    o3 = jnp.dot(o2, w3_ref[...], preferred_element_type=jnp.float32)  # (TH*W, 4P)
    o3 = o3 + b3_ref[...]
    res = x_ref[0].reshape(TH * W, Cin).astype(jnp.float32)  # late re-read
    out = jnp.maximum(o3 + res, 0.0)
    o_ref[0] = out.reshape(TH, W, Cin).astype(o_ref.dtype)


def _pick_tile_h(H, target=32):
    """Largest divisor of H that is <= target; never degrades to tiny tiles
    (awkward / prime H falls back to the full height)."""
    if H <= target:
        return H
    for t in range(target, 0, -1):
        if H % t == 0:
            if t < 4:          # only tiny divisors exist -> overhead-dominated
                return H
            return t
    return H


def _vmem_estimate_bytes(th, W, Cin, P, cdt_bytes, x_bytes, fused):
    weights = (Cin * P + 9 * P * P + P * 4 * P) * cdt_bytes * 2   # double-buffered
    biases = 6 * P * 4 * 2
    acts = (2 * th * W * Cin + 2 * W * Cin) * x_bytes * 2         # x, out, halo
    scratch = (th + 2) * W * P * cdt_bytes
    win = (th + 2) * W * 3 * P * cdt_bytes
    band = th * W * (9 if fused else 3) * P * cdt_bytes
    acc = th * W * 4 * P * 4 * 2                                  # f32 temporaries
    return weights + biases + acts + scratch + win + band + acc


@functools.partial(jax.jit,
                   static_argnames=("tile_h", "compute_dtype", "fuse_conv2"))
def bottleneck_forward_nhwc(x, w1, w2, w3, s1, b1, s2, b2, s3, b3,
                            tile_h=None, compute_dtype=None, fuse_conv2=None):
    """x: (N, H, W, Cin) NHWC.  w1 (Cin,P), w2 (3,3,P,P) HWIO, w3 (P,4P).
    s*/b*: per-channel folded BN scale/bias, shape (C,)."""
    N, H, W, Cin = x.shape
    P = w1.shape[1]
    if Cin != 4 * P:
        raise ValueError("identity residual requires inplanes == 4 * planes")
    cdt = compute_dtype or x.dtype
    th = tile_h or _pick_tile_h(H)
    if H % th:
        raise ValueError("tile_h must divide H")
    nt = H // th
    fused = fuse_conv2 if fuse_conv2 is not None else (P <= 128)

    # Fold the (eval-mode) BN scale into the conv weights; keep only the bias.
    w1f = (w1 * s1[None, :]).astype(cdt)                              # (Cin, P)
    w2s = w2 * s2[None, None, None, :]                                # (3,3,P,P)
    w2f = (w2s.reshape(9 * P, P) if fused
           else w2s.reshape(3, 3 * P, P)).astype(cdt)
    w3f = (w3 * s3[None, :]).astype(cdt)                              # (P, 4P)
    b1f = b1.reshape(1, P).astype(jnp.float32)
    b2f = b2.reshape(1, P).astype(jnp.float32)
    b3f = b3.reshape(1, 4 * P).astype(jnp.float32)

    # Halo rows per tile (row above / below), built from strided slices of x —
    # no full padded copy of x through HBM.
    zrow = jnp.zeros((N, 1, W, Cin), x.dtype)
    if nt > 1:
        top = jnp.concatenate([zrow, x[:, th - 1:H - 1:th]], axis=1)  # (N,nt,W,C)
        bot = jnp.concatenate([x[:, th:H:th], zrow], axis=1)          # (N,nt,W,C)
    else:
        top, bot = zrow, zrow
    halo = jnp.stack([top, bot], axis=2).reshape(N, 2 * nt, W, Cin)   # rows 2i,2i+1

    # Generation-aware-ish VMEM budget: size from actual footprint, clamp to
    # [32 MiB, 64 MiB] (v7x has 64 MiB per TensorCore).
    est = _vmem_estimate_bytes(th, W, Cin, P, jnp.dtype(cdt).itemsize,
                               jnp.dtype(x.dtype).itemsize, fused)
    vmem_limit = int(min(max(2 * est, 32 * 1024 * 1024), 64 * 1024 * 1024))

    bcast = lambda a: pl.BlockSpec(a.shape, lambda n, i, _nd=a.ndim: (0,) * _nd)

    return pl.pallas_call(
        _bottleneck_kernel,
        out_shape=jax.ShapeDtypeStruct((N, H, W, Cin), x.dtype),
        grid=(N, nt),
        in_specs=[
            pl.BlockSpec((1, th, W, Cin), lambda n, i: (n, i, 0, 0)),
            pl.BlockSpec((1, 2, W, Cin), lambda n, i: (n, i, 0, 0)),
            bcast(w1f), bcast(b1f), bcast(w2f), bcast(b2f),
            bcast(w3f), bcast(b3f),
        ],
        out_specs=pl.BlockSpec((1, th, W, Cin), lambda n, i: (n, i, 0, 0)),
        scratch_shapes=[pltpu.VMEM((th + 2, W, P), cdt)],
        compiler_params=pltpu.CompilerParams(
            dimension_semantics=("parallel", "parallel"),
            vmem_limit_bytes=vmem_limit),
    )(x, halo, w1f, b1f, w2f, b2f, w3f, b3f)


def bottleneck_forward_nchw(x_nchw, *args, **kwargs):
    # TODO(synk): keep the surrounding model NHWC end-to-end; these transposes
    # are two extra HBM passes per call and exist only for the PyTorch NCHW API.
    x = jnp.transpose(x_nchw, (0, 2, 3, 1))
    y = bottleneck_forward_nhwc(x, *args, **kwargs)
    return jnp.transpose(y, (0, 3, 1, 2))


def _fold_bn(gamma, beta, mean, var, eps=1e-5):
    scale = gamma / jnp.sqrt(var + eps)
    bias = beta - mean * scale
    return scale, bias


def _reference_nhwc(x, w1, w2, w3, s1, b1, s2, b2, s3, b3):
    """Pure-JAX NHWC reference for correctness checking."""
    def conv(y, w_hwio, pad=0):
        return lax.conv_general_dilated(
            y, w_hwio, (1, 1), [(pad, pad), (pad, pad)],
            dimension_numbers=("NHWC", "HWIO", "NHWC"))
    bn = lambda y, s, b: y * s[None, None, None, :] + b[None, None, None, :]
    o = jax.nn.relu(bn(conv(x, w1[None, None]), s1, b1))
    o = jax.nn.relu(bn(conv(o, w2, pad=1), s2, b2))
    o = bn(conv(o, w3[None, None]), s3, b3)
    return jax.nn.relu(o + x)


if __name__ == "__main__":
    # Small shapes consistent with the module: inplanes = planes * 4 so the
    # identity residual is valid (stride=1, downsample=None).
    N, planes, H, W = 2, 4, 16, 16
    inplanes = planes * 4            # 16

    key = jax.random.PRNGKey(0)
    ks = jax.random.split(key, 16)

    x_nhwc = jax.random.normal(ks[0], (N, H, W, inplanes), jnp.float32)

    w1 = jax.random.normal(ks[1], (inplanes, planes), jnp.float32) * 0.1
    w2 = jax.random.normal(ks[2], (3, 3, planes, planes), jnp.float32) * 0.1
    w3 = jax.random.normal(ks[3], (planes, planes * 4), jnp.float32) * 0.1

    def bn_params(kg, kb, km, kv, c):
        gamma = 1.0 + 0.1 * jax.random.normal(kg, (c,), jnp.float32)
        beta = 0.1 * jax.random.normal(kb, (c,), jnp.float32)
        mean = 0.1 * jax.random.normal(km, (c,), jnp.float32)
        var = jax.random.uniform(kv, (c,), jnp.float32, minval=0.5, maxval=1.5)
        return _fold_bn(gamma, beta, mean, var)

    s1, b1 = bn_params(ks[4], ks[5], ks[6], ks[7], planes)
    s2, b2 = bn_params(ks[8], ks[9], ks[10], ks[11], planes)
    s3, b3 = bn_params(ks[12], ks[13], ks[14], ks[15], planes * 4)

    ref = _reference_nhwc(x_nhwc, w1, w2, w3, s1, b1, s2, b2, s3, b3)

    # f32, multi-row-tile grid (exercises halo rows), fused-K conv2 (P<=128).
    out = bottleneck_forward_nhwc(x_nhwc, w1, w2, w3, s1, b1, s2, b2, s3, b3,
                                  tile_h=8)
    out = jax.block_until_ready(out)
    assert out.shape == ref.shape
    assert jnp.allclose(out, ref, atol=1e-4, rtol=1e-4), (
        float(jnp.max(jnp.abs(out - ref))))

    # f32, full-H tile, per-kh (unfused) conv2 path.
    out_u = bottleneck_forward_nhwc(x_nhwc, w1, w2, w3, s1, b1, s2, b2, s3, b3,
                                    fuse_conv2=False)
    out_u = jax.block_until_ready(out_u)
    assert jnp.allclose(out_u, ref, atol=1e-4, rtol=1e-4), (
        float(jnp.max(jnp.abs(out_u - ref))))

    # bf16 MXU-input path (v6e / v7x friendly), f32 accumulation.
    out_bf = bottleneck_forward_nhwc(x_nhwc, w1, w2, w3, s1, b1, s2, b2, s3, b3,
                                     tile_h=8, compute_dtype=jnp.bfloat16)
    out_bf = jax.block_until_ready(out_bf)
    assert jnp.allclose(out_bf.astype(jnp.float32), ref, atol=1e-1, rtol=1e-1), (
        float(jnp.max(jnp.abs(out_bf.astype(jnp.float32) - ref))))

    # PyTorch-layout convenience wrapper (NCHW in / NCHW out).
    x_nchw = jnp.transpose(x_nhwc, (0, 3, 1, 2))
    out_nchw = bottleneck_forward_nchw(x_nchw, w1, w2, w3, s1, b1, s2, b2, s3, b3,
                                       tile_h=8)
    out_nchw = jax.block_until_ready(out_nchw)
    assert jnp.allclose(jnp.transpose(out_nchw, (0, 2, 3, 1)), ref,
                        atol=1e-4, rtol=1e-4)

    print("KERNEL_OK")
</pallas_src>

<mosaic_0001>
module attributes {stable_mosaic.version = 11 : i64} {
  func.func @_bottleneck_kernel(%arg0: i32, %arg1: i32, %arg2: memref<1x8x16x16xf32, #tpu.memory_space<vmem>>, %arg3: memref<1x2x16x16xf32, #tpu.memory_space<vmem>>, %arg4: memref<16x4xf32, #tpu.memory_space<vmem>>, %arg5: memref<1x4xf32, #tpu.memory_space<vmem>>, %arg6: memref<36x4xf32, #tpu.memory_space<vmem>>, %arg7: memref<1x4xf32, #tpu.memory_space<vmem>>, %arg8: memref<4x16xf32, #tpu.memory_space<vmem>>, %arg9: memref<1x16xf32, #tpu.memory_space<vmem>>, %arg10: memref<1x8x16x16xf32, #tpu.memory_space<vmem>>, %arg11: memref<10x16x4xf32, #tpu.memory_space<vmem>>) attributes {dimension_semantics = [#tpu.dimension_semantics<parallel>, #tpu.dimension_semantics<parallel>], iteration_bounds = array<i64: 2, 2>, scalar_prefetch = 0 : i64, scratch_operands = 1 : i64, tpu.core_type = #tpu.core_type<tc>, window_params = [{transform_indices = @transform_0, window_bounds = array<i64: 1, 8, 16, 16>}, {transform_indices = @transform_1, window_bounds = array<i64: 1, 2, 16, 16>}, {pipeline_mode = #tpu.pipeline_mode<synchronous>, transform_indices = @transform_2, window_bounds = array<i64: 16, 4>}, {pipeline_mode = #tpu.pipeline_mode<synchronous>, transform_indices = @transform_3, window_bounds = array<i64: 1, 4>}, {pipeline_mode = #tpu.pipeline_mode<synchronous>, transform_indices = @transform_4, window_bounds = array<i64: 36, 4>}, {pipeline_mode = #tpu.pipeline_mode<synchronous>, transform_indices = @transform_5, window_bounds = array<i64: 1, 4>}, {pipeline_mode = #tpu.pipeline_mode<synchronous>, transform_indices = @transform_6, window_bounds = array<i64: 4, 16>}, {pipeline_mode = #tpu.pipeline_mode<synchronous>, transform_indices = @transform_7, window_bounds = array<i64: 1, 16>}, {transform_indices = @transform_8, window_bounds = array<i64: 1, 8, 16, 16>}]} {
    %c0 = arith.constant 0 : index
    %c0_0 = arith.constant 0 : index
    %c0_1 = arith.constant 0 : index
    %c0_2 = arith.constant 0 : index
    %0 = vector.load %arg2[%c0, %c0_0, %c0_1, %c0_2] : memref<1x8x16x16xf32, #tpu.memory_space<vmem>>, vector<1x8x16x16xf32>
    %1 = vector.shape_cast %0 : vector<1x8x16x16xf32> to vector<8x16x16xf32>
    %2 = vector.shape_cast %1 : vector<8x16x16xf32> to vector<128x16xf32>
    %c0_3 = arith.constant 0 : index
    %c0_4 = arith.constant 0 : index
    %3 = vector.load %arg4[%c0_3, %c0_4] : memref<16x4xf32, #tpu.memory_space<vmem>>, vector<16x4xf32>
    %cst = arith.constant dense<0.000000e+00> : vector<128x4xf32>
    %4 = tpu.matmul %2, %3, %cst {dimension_numbers = #tpu.dot_dimension_numbers<[1], [0], [0], [1], [0, 0, 1, 1], [], []>} : vector<128x16xf32>, vector<16x4xf32>, vector<128x4xf32> -> vector<128x4xf32>
    %c0_5 = arith.constant 0 : index
    %c0_6 = arith.constant 0 : index
    %5 = vector.load %arg5[%c0_5, %c0_6] : memref<1x4xf32, #tpu.memory_space<vmem>>, vector<1x4xf32>
    %6 = vector.broadcast %5 : vector<1x4xf32> to vector<128x4xf32>
    %7 = arith.addf %4, %6 : vector<128x4xf32>
    %cst_7 = arith.constant 0.000000e+00 : f32
    %8 = vector.broadcast %cst_7 : f32 to vector<128x4xf32>
    %9 = arith.maximumf %7, %8 : vector<128x4xf32>
    %10 = vector.shape_cast %9 : vector<128x4xf32> to vector<8x16x4xf32>
    %c1 = arith.constant 1 : index
    %c0_8 = arith.constant 0 : index
    %c0_9 = arith.constant 0 : index
    %11 = vector.load %arg11[%c1, %c0_8, %c0_9] : memref<10x16x4xf32, #tpu.memory_space<vmem>>, vector<8x16x4xf32>
    tpu.vector_store %arg11[%c1, %c0_8, %c0_9], %10 {strides = array<i32>} : memref<10x16x4xf32, #tpu.memory_space<vmem>>, vector<8x16x4xf32>,
    %c0_10 = arith.constant 0 : index
    %c0_11 = arith.constant 0 : index
    %c0_12 = arith.constant 0 : index
    %c0_13 = arith.constant 0 : index
    %12 = vector.load %arg3[%c0_10, %c0_11, %c0_12, %c0_13] : memref<1x2x16x16xf32, #tpu.memory_space<vmem>>, vector<1x2x16x16xf32>
    %13 = vector.shape_cast %12 : vector<1x2x16x16xf32> to vector<2x16x16xf32>
    %14 = vector.shape_cast %13 : vector<2x16x16xf32> to vector<32x16xf32>
    %c0_14 = arith.constant 0 : index
    %c0_15 = arith.constant 0 : index
    %15 = vector.load %arg4[%c0_14, %c0_15] : memref<16x4xf32, #tpu.memory_space<vmem>>, vector<16x4xf32>
    %cst_16 = arith.constant dense<0.000000e+00> : vector<32x4xf32>
    %16 = tpu.matmul %14, %15, %cst_16 {dimension_numbers = #tpu.dot_dimension_numbers<[1], [0], [0], [1], [0, 0, 1, 1], [], []>} : vector<32x16xf32>, vector<16x4xf32>, vector<32x4xf32> -> vector<32x4xf32>
    %c0_17 = arith.constant 0 : index
    %c0_18 = arith.constant 0 : index
    %17 = vector.load %arg5[%c0_17, %c0_18] : memref<1x4xf32, #tpu.memory_space<vmem>>, vector<1x4xf32>
    %18 = vector.broadcast %17 : vector<1x4xf32> to vector<32x4xf32>
    %19 = arith.addf %16, %18 : vector<32x4xf32>
    %cst_19 = arith.constant 0.000000e+00 : f32
    %20 = vector.broadcast %cst_19 : f32 to vector<32x4xf32>
    %21 = arith.maximumf %19, %20 : vector<32x4xf32>
    %22 = vector.shape_cast %21 : vector<32x4xf32> to vector<2x16x4xf32>
    %c0_i32 = arith.constant 0 : i32
    %23 = arith.cmpi eq, %arg1, %c0_i32 : i32
    %cst_20 = arith.constant 0.000000e+00 : f32
    %cst_21 = arith.constant 1.000000e+00 : f32
    %24 = arith.select %23, %cst_20, %cst_21 : f32
    %c1_i32 = arith.constant 1 : i32
    %25 = arith.cmpi eq, %arg1, %c1_i32 : i32
    %cst_22 = arith.constant 0.000000e+00 : f32
    %cst_23 = arith.constant 1.000000e+00 : f32
    %26 = arith.select %25, %cst_22, %cst_23 : f32
    %27 = vector.extract_strided_slice %22 {offsets = [0, 0, 0], sizes = [1, 16, 4], strides = [1, 1, 1]} : vector<2x16x4xf32> to vector<1x16x4xf32>
    %28 = vector.broadcast %24 : f32 to vector<1x16x4xf32>
    %29 = arith.mulf %27, %28 : vector<1x16x4xf32>
    %c0_24 = arith.constant 0 : index
    %c0_25 = arith.constant 0 : index
    %c0_26 = arith.constant 0 : index
    %30 = vector.load %arg11[%c0_24, %c0_25, %c0_26] : memref<10x16x4xf32, #tpu.memory_space<vmem>>, vector<1x16x4xf32>
    tpu.vector_store %arg11[%c0_24, %c0_25, %c0_26], %29 {strides = array<i32>} : memref<10x16x4xf32, #tpu.memory_space<vmem>>, vector<1x16x4xf32>,
    %31 = vector.extract_strided_slice %22 {offsets = [1, 0, 0], sizes = [1, 16, 4], strides = [1, 1, 1]} : vector<2x16x4xf32> to vector<1x16x4xf32>
    %32 = vector.broadcast %26 : f32 to vector<1x16x4xf32>
    %33 = arith.mulf %31, %32 : vector<1x16x4xf32>
    %c9 = arith.constant 9 : index
    %c0_27 = arith.constant 0 : index
    %c0_28 = arith.constant 0 : index
    %34 = vector.load %arg11[%c9, %c0_27, %c0_28] : memref<10x16x4xf32, #tpu.memory_space<vmem>>, vector<1x16x4xf32>
    tpu.vector_store %arg11[%c9, %c0_27, %c0_28], %33 {strides = array<i32>} : memref<10x16x4xf32, #tpu.memory_space<vmem>>, vector<1x16x4xf32>,
    %c0_29 = arith.constant 0 : index
    %c0_30 = arith.constant 0 : index
    %c0_31 = arith.constant 0 : index
    %35 = vector.load %arg11[%c0_29, %c0_30, %c0_31] : memref<10x16x4xf32, #tpu.memory_space<vmem>>, vector<10x16x4xf32>
    %36 = tpu.iota {dimensions = array<i32: 1>} : vector<1x16x1xi32>
    %c0_i32_32 = arith.constant 0 : i32
    %37 = vector.broadcast %c0_i32_32 : i32 to vector<1x16x1xi32>
    %38 = arith.cmpi sgt, %36, %37 : vector<1x16x1xi32>
    %39 = arith.extui %38 : vector<1x16x1xi1> to vector<1x16x1xi32>
    %40 = arith.sitofp %39 : vector<1x16x1xi32> to vector<1x16x1xf32>
    %c15_i32 = arith.constant 15 : i32
    %41 = vector.broadcast %c15_i32 : i32 to vector<1x16x1xi32>
    %42 = arith.cmpi slt, %36, %41 : vector<1x16x1xi32>
    %43 = arith.extui %42 : vector<1x16x1xi1> to vector<1x16x1xi32>
    %44 = arith.sitofp %43 : vector<1x16x1xi32> to vector<1x16x1xf32>
    %c1_i32_33 = arith.constant 1 : i32
    %45 = tpu.dynamic_rotate %35 by %c1_i32_33 dim 1 : vector<10x16x4xf32>, i32 -> vector<10x16x4xf32>
    %46 = vector.broadcast %40 : vector<1x16x1xf32> to vector<10x16x4xf32>
    %47 = arith.mulf %45, %46 : vector<10x16x4xf32>
    %c15_i32_34 = arith.constant 15 : i32
    %48 = tpu.dynamic_rotate %35 by %c15_i32_34 dim 1 : vector<10x16x4xf32>, i32 -> vector<10x16x4xf32>
    %49 = vector.broadcast %44 : vector<1x16x1xf32> to vector<10x16x4xf32>
    %50 = arith.mulf %48, %49 : vector<10x16x4xf32>
    %51 = tpu.concatenate %47, %35, %50 in 2 : vector<10x16x4xf32>, vector<10x16x4xf32>, vector<10x16x4xf32> -> vector<10x16x12xf32>
    %52 = vector.extract_strided_slice %51 {offsets = [0, 0, 0], sizes = [8, 16, 12], strides = [1, 1, 1]} : vector<10x16x12xf32> to vector<8x16x12xf32>
    %53 = vector.extract_strided_slice %51 {offsets = [1, 0, 0], sizes = [8, 16, 12], strides = [1, 1, 1]} : vector<10x16x12xf32> to vector<8x16x12xf32>
    %54 = vector.extract_strided_slice %51 {offsets = [2, 0, 0], sizes = [8, 16, 12], strides = [1, 1, 1]} : vector<10x16x12xf32> to vector<8x16x12xf32>
    %55 = tpu.concatenate %52, %53, %54 in 2 : vector<8x16x12xf32>, vector<8x16x12xf32>, vector<8x16x12xf32> -> vector<8x16x36xf32>
    %56 = vector.shape_cast %55 : vector<8x16x36xf32> to vector<128x36xf32>
    %c0_35 = arith.constant 0 : index
    %c0_36 = arith.constant 0 : index
    %57 = vector.load %arg6[%c0_35, %c0_36] : memref<36x4xf32, #tpu.memory_space<vmem>>, vector<36x4xf32>
    %cst_37 = arith.constant dense<0.000000e+00> : vector<128x4xf32>
    %58 = tpu.matmul %56, %57, %cst_37 {dimension_numbers = #tpu.dot_dimension_numbers<[1], [0], [0], [1], [0, 0, 1, 1], [], []>} : vector<128x36xf32>, vector<36x4xf32>, vector<128x4xf32> -> vector<128x4xf32>
    %c0_38 = arith.constant 0 : index
    %c0_39 = arith.constant 0 : index
    %59 = vector.load %arg7[%c0_38, %c0_39] : memref<1x4xf32, #tpu.memory_space<vmem>>, vector<1x4xf32>
    %60 = vector.broadcast %59 : vector<1x4xf32> to vector<128x4xf32>
    %61 = arith.addf %58, %60 : vector<128x4xf32>
    %cst_40 = arith.constant 0.000000e+00 : f32
    %62 = vector.broadcast %cst_40 : f32 to vector<128x4xf32>
    %63 = arith.maximumf %61, %62 : vector<128x4xf32>
    %c0_41 = arith.constant 0 : index
    %c0_42 = arith.constant 0 : index
    %64 = vector.load %arg8[%c0_41, %c0_42] : memref<4x16xf32, #tpu.memory_space<vmem>>, vector<4x16xf32>
    %cst_43 = arith.constant dense<0.000000e+00> : vector<128x16xf32>
    %65 = tpu.matmul %63, %64, %cst_43 {dimension_numbers = #tpu.dot_dimension_numbers<[1], [0], [0], [1], [0, 0, 1, 1], [], []>} : vector<128x4xf32>, vector<4x16xf32>, vector<128x16xf32> -> vector<128x16xf32>
    %c0_44 = arith.constant 0 : index
    %c0_45 = arith.constant 0 : index
    %66 = vector.load %arg9[%c0_44, %c0_45] : memref<1x16xf32, #tpu.memory_space<vmem>>, vector<1x16xf32>
    %67 = vector.broadcast %66 : vector<1x16xf32> to vector<128x16xf32>
    %68 = arith.addf %65, %67 : vector<128x16xf32>
    %c0_46 = arith.constant 0 : index
    %c0_47 = arith.constant 0 : index
    %c0_48 = arith.constant 0 : index
    %c0_49 = arith.constant 0 : index
    %69 = vector.load %arg2[%c0_46, %c0_47, %c0_48, %c0_49] : memref<1x8x16x16xf32, #tpu.memory_space<vmem>>, vector<1x8x16x16xf32>
    %70 = vector.shape_cast %69 : vector<1x8x16x16xf32> to vector<8x16x16xf32>
    %71 = vector.shape_cast %70 : vector<8x16x16xf32> to vector<128x16xf32>
    %72 = arith.addf %68, %71 : vector<128x16xf32>
    %cst_50 = arith.constant 0.000000e+00 : f32
    %73 = vector.broadcast %cst_50 : f32 to vector<128x16xf32>
    %74 = arith.maximumf %72, %73 : vector<128x16xf32>
    %75 = vector.shape_cast %74 : vector<128x16xf32> to vector<8x16x16xf32>
    %c0_51 = arith.constant 0 : index
    %c0_52 = arith.constant 0 : index
    %c0_53 = arith.constant 0 : index
    %c0_54 = arith.constant 0 : index
    %76 = vector.load %arg10[%c0_51, %c0_52, %c0_53, %c0_54] : memref<1x8x16x16xf32, #tpu.memory_space<vmem>>, vector<1x8x16x16xf32>
    %77 = vector.shape_cast %76 : vector<1x8x16x16xf32> to vector<8x16x16xf32>
    %78 = vector.shape_cast %75 : vector<8x16x16xf32> to vector<1x8x16x16xf32>
    tpu.vector_store %arg10[%c0_51, %c0_52, %c0_53, %c0_54], %78 {strides = array<i32>} : memref<1x8x16x16xf32, #tpu.memory_space<vmem>>, vector<1x8x16x16xf32>,
    return
  }
  func.func @transform_0(%arg0: i32, %arg1: i32) -> (i32, i32, i32, i32) {
    %c0_i32 = arith.constant 0 : i32
    %c0_i32_0 = arith.constant 0 : i32
    %c0_i32_1 = arith.constant 0 : i32
    return %arg0, %arg1, %c0_i32, %c0_i32_0 : i32, i32, i32, i32
  }
  func.func @transform_1(%arg0: i32, %arg1: i32) -> (i32, i32, i32, i32) {
    %c0_i32 = arith.constant 0 : i32
    %c0_i32_0 = arith.constant 0 : i32
    %c0_i32_1 = arith.constant 0 : i32
    return %arg0, %arg1, %c0_i32, %c0_i32_0 : i32, i32, i32, i32
  }
  func.func @transform_2(%arg0: i32, %arg1: i32) -> (i32, i32) {
    %c0_i32 = arith.constant 0 : i32
    %c0_i32_0 = arith.constant 0 : i32
    %c0_i32_1 = arith.constant 0 : i32
    return %c0_i32, %c0_i32_0 : i32, i32
  }
  func.func @transform_3(%arg0: i32, %arg1: i32) -> (i32, i32) {
    %c0_i32 = arith.constant 0 : i32
    %c0_i32_0 = arith.constant 0 : i32
    %c0_i32_1 = arith.constant 0 : i32
    return %c0_i32, %c0_i32_0 : i32, i32
  }
  func.func @transform_4(%arg0: i32, %arg1: i32) -> (i32, i32) {
    %c0_i32 = arith.constant 0 : i32
    %c0_i32_0 = arith.constant 0 : i32
    %c0_i32_1 = arith.constant 0 : i32
    return %c0_i32, %c0_i32_0 : i32, i32
  }
  func.func @transform_5(%arg0: i32, %arg1: i32) -> (i32, i32) {
    %c0_i32 = arith.constant 0 : i32
    %c0_i32_0 = arith.constant 0 : i32
    %c0_i32_1 = arith.constant 0 : i32
    return %c0_i32, %c0_i32_0 : i32, i32
  }
  func.func @transform_6(%arg0: i32, %arg1: i32) -> (i32, i32) {
    %c0_i32 = arith.constant 0 : i32
    %c0_i32_0 = arith.constant 0 : i32
    %c0_i32_1 = arith.constant 0 : i32
    return %c0_i32, %c0_i32_0 : i32, i32
  }
  func.func @transform_7(%arg0: i32, %arg1: i32) -> (i32, i32) {
    %c0_i32 = arith.constant 0 : i32
    %c0_i32_0 = arith.constant 0 : i32
    %c0_i32_1 = arith.constant 0 : i32
    return %c0_i32, %c0_i32_0 : i32, i32
  }
  func.func @transform_8(%arg0: i32, %arg1: i32) -> (i32, i32, i32, i32) {
    %c0_i32 = arith.constant 0 : i32
    %c0_i32_0 = arith.constant 0 : i32
    %c0_i32_1 = arith.constant 0 : i32
    return %arg0, %arg1, %c0_i32, %c0_i32_0 : i32, i32, i32, i32
  }
}

</mosaic_0001>

<llo_original>
// kernel: bottleneck_forward_nhwc.1
$region0: #{bottleneck_forward_nhwc.1}
  #allocation0 [shape = 'u32[]', space=smem, size = 0x4, offset = 0x4, fixed_abs, tag = 'smem constant byte address 0x4 - core index']
  #allocation1 [shape = 'u32[144,128]{1,0:T(1,128)}', space=vmem, size = 0x12000, scoped, tag = 'internal scratch']
  #allocation2 [shape = 'f32[10,16,4]{2,1,0:T(8,128)}', space=vmem, size = 0x14000, scoped, tag = 'scratch operand']
  %s0 = inlined_call_operand.vmem [shape: f32[2,16,16,16], index: 0, kind: input, shape index: {}]
  %s1 = inlined_call_operand.vmem [shape: f32[2,4,16,16], index: 1, kind: input, shape index: {}]
  %s2 = inlined_call_operand.vmem [shape: f32[16,4], index: 2, kind: input, shape index: {}]
  %s3 = inlined_call_operand.vmem [shape: f32[1,4], index: 3, kind: input, shape index: {}]
  %s4 = inlined_call_operand.vmem [shape: f32[36,4], index: 4, kind: input, shape index: {}]
  %s5 = inlined_call_operand.vmem [shape: f32[1,4], index: 5, kind: input, shape index: {}]
  %s6 = inlined_call_operand.vmem [shape: f32[4,16], index: 6, kind: input, shape index: {}]
  %s7 = inlined_call_operand.vmem [shape: f32[1,16], index: 7, kind: input, shape index: {}]
  %s8 = inlined_call_operand.hbm [shape: f32[2,16,16,16], index: 8, kind: output, shape index: {}]
  %s9 = sld [smem:[#allocation0]]
  $region65: #{bottleneck_forward_nhwc.1} parent=0
    _
  %s11 = ssub.s32 1, %s9
  %s12 = scalar_select 0, %s11, %s9
  $region1: #{bottleneck_forward_nhwc.1} parent=0
    #allocation3 [shape = 'u8[131072]{0}', space=vmem, size = 0x20000, scoped, tag = 'output window, operand 0']
    #allocation4 [shape = 's32[2]{0}', space=sflag, size = 0x8, scoped, tag = 'scoped memory for bottleneck_forward_nhwc.1']
    %13 = vsyncpa [#allocation4], 0
    %s14 = scalar_lea.sflag [#allocation4], 1
    %15 = vsyncpa %s14, 0
    loop: start=0, step=1, limit=6
    $region2: #{bottleneck_forward_nhwc.1} parent=1 // loop_pre_header
      _
    $region3: #{bottleneck_forward_nhwc.1} parent=1 // loop_header
      %s17 = sphi 0, %s21
      %p18 = scmp.ge.s32.totalorder %s17, 6
      %s24 = sphi 0, %s36
      %s25 = sphi 0, %s32
      %s26 = sphi 0, %s24
      %s27 = sphi 0, %s25
      %s28 = sphi 0, %s26
      %s29 = sphi 0, %s27
      %s41 = sphi 0, %s43
      %s44 = sphi 0, %s41
      %s45 = sphi 0, %s44
      %s61 = sphi 0, %s45
      %s69 = sphi 0, %s71
      %s72 = sphi 0, %s69
      %s73 = sphi 0, %s72
      %s89 = sphi 0, %s73
      %s93 = sphi 0, %s93
      %s95 = sphi 0, %s93
      %s96 = sphi 0, %s95
      %s110 = sphi 0, %s96
      %s114 = sphi 0, %s114
      %s116 = sphi 0, %s114
      %s117 = sphi 0, %s116
      %s131 = sphi 0, %s117
      %s135 = sphi 0, %s135
      %s137 = sphi 0, %s135
      %s138 = sphi 0, %s137
      %s152 = sphi 0, %s138
      %s156 = sphi 0, %s156
      %s158 = sphi 0, %s156
      %s159 = sphi 0, %s158
      %s173 = sphi 0, %s159
      %s177 = sphi 0, %s177
      %s179 = sphi 0, %s177
      %s180 = sphi 0, %s179
      %s194 = sphi 0, %s180
      %s198 = sphi 0, %s198
      %s200 = sphi 0, %s198
      %s201 = sphi 0, %s200
      %s215 = sphi 0, %s201
      %s223 = sphi 0, %s225
      %s226 = sphi 0, %s223
      %s227 = sphi 0, %s226
      %s243 = sphi 0, %s227
    $region4: #{bottleneck_forward_nhwc.1} parent=1 // loop_header_branch
      %20 = sbr.rel (%p18) target = $region8
    $region5: #{bottleneck_forward_nhwc.1} parent=1 // loop_body
      %s22 = ssub.s32 %s17, 1
      %s23 = ssub.s32 %s17, 2
      %s30 = sadd.s32 1, %s25
      %p31 = scmp.ge.s32.totalorder %s30, 2
      %s32 = scalar_select %p31, 0, %s30
      %s33 = sadd.s32 1, %s24
      %s34 = scalar_select %p31, %s33, %s24
      %p35 = scmp.ge.s32.totalorder %s34, 2
      %s36 = scalar_select %p35, 0, %s34
      %s37 = ssub.s32 %s24, %s36
      %s38 = ssub.s32 %s25, %s32
      %s39 = sor.u32 %s37, %s38
      %p40 = scmp.eq.s32.totalorder %s39, 0
      %s42 = sadd.s32 %s41, 1
      %s43 = scalar_select %p40, %s41, %s42
      %p46 = pneg %p40
      %p47 = scmp.eq.s32.totalorder %s17, 3
      %p48 = por %p46, %p47
      %p49 = scmp.ne.s32.totalorder %s41, %s44
      %p50 = scmp.eq.s32.totalorder %s17, 0
      %p51 = por %p49, %p50
      %p52 = scmp.ne.s32.totalorder %s41, %s44
      %p53 = scmp.eq.s32.totalorder %s22, 3
      %p54 = por %p52, %p53
      %p55 = scmp.ne.s32.totalorder %s44, %s45
      %p56 = scmp.eq.s32.totalorder %s22, 0
      %p57 = por %p55, %p56
      %p58 = scmp.ne.s32.totalorder %s44, %s45
      %p59 = scmp.eq.s32.totalorder %s23, 3
      %p60 = por %p58, %p59
      %p62 = scmp.ne.s32.totalorder %s45, %s61
      %p63 = scmp.eq.s32.totalorder %s23, 0
      %p64 = por %p62, %p63
      %s65 = ssub.s32 %s24, %s36
      %s66 = ssub.s32 %s25, %s32
      %s67 = sor.u32 %s65, %s66
      %p68 = scmp.eq.s32.totalorder %s67, 0
      %s70 = sadd.s32 %s69, 1
      %s71 = scalar_select %p68, %s69, %s70
      %p74 = pneg %p68
      %p75 = scmp.eq.s32.totalorder %s17, 3
      %p76 = por %p74, %p75
      %p77 = scmp.ne.s32.totalorder %s69, %s72
      %p78 = scmp.eq.s32.totalorder %s17, 0
      %p79 = por %p77, %p78
      %p80 = scmp.ne.s32.totalorder %s69, %s72
      %p81 = scmp.eq.s32.totalorder %s22, 3
      %p82 = por %p80, %p81
      %p83 = scmp.ne.s32.totalorder %s72, %s73
      %p84 = scmp.eq.s32.totalorder %s22, 0
      %p85 = por %p83, %p84
      %p86 = scmp.ne.s32.totalorder %s72, %s73
      %p87 = scmp.eq.s32.totalorder %s23, 3
      %p88 = por %p86, %p87
      %p90 = scmp.ne.s32.totalorder %s73, %s89
      %p91 = scmp.eq.s32.totalorder %s23, 0
      %p92 = por %p90, %p91
      %s94 = sadd.s32 %s93, 1
      %p97 = scmp.eq.s32.totalorder %s17, 3
      %p98 = scmp.ne.s32.totalorder %s93, %s95
      %p99 = scmp.eq.s32.totalorder %s17, 0
      %p100 = por %p98, %p99
      %p101 = scmp.ne.s32.totalorder %s93, %s95
      %p102 = scmp.eq.s32.totalorder %s22, 3
      %p103 = por %p101, %p102
      %p104 = scmp.ne.s32.totalorder %s95, %s96
      %p105 = scmp.eq.s32.totalorder %s22, 0
      %p106 = por %p104, %p105
      %p107 = scmp.ne.s32.totalorder %s95, %s96
      %p108 = scmp.eq.s32.totalorder %s23, 3
      %p109 = por %p107, %p108
      %p111 = scmp.ne.s32.totalorder %s96, %s110
      %p112 = scmp.eq.s32.totalorder %s23, 0
      %p113 = por %p111, %p112
      %s115 = sadd.s32 %s114, 1
      %p118 = scmp.eq.s32.totalorder %s17, 3
      %p119 = scmp.ne.s32.totalorder %s114, %s116
      %p120 = scmp.eq.s32.totalorder %s17, 0
      %p121 = por %p119, %p120
      %p122 = scmp.ne.s32.totalorder %s114, %s116
      %p123 = scmp.eq.s32.totalorder %s22, 3
      %p124 = por %p122, %p123
      %p125 = scmp.ne.s32.totalorder %s116, %s117
      %p126 = scmp.eq.s32.totalorder %s22, 0
      %p127 = por %p125, %p126
      %p128 = scmp.ne.s32.totalorder %s116, %s117
      %p129 = scmp.eq.s32.totalorder %s23, 3
      %p130 = por %p128, %p129
      %p132 = scmp.ne.s32.totalorder %s117, %s131
      %p133 = scmp.eq.s32.totalorder %s23, 0
      %p134 = por %p132, %p133
      %s136 = sadd.s32 %s135, 1
      %p139 = scmp.eq.s32.totalorder %s17, 3
      %p140 = scmp.ne.s32.totalorder %s135, %s137
      %p141 = scmp.eq.s32.totalorder %s17, 0
      %p142 = por %p140, %p141
      %p143 = scmp.ne.s32.totalorder %s135, %s137
      %p144 = scmp.eq.s32.totalorder %s22, 3
      %p145 = por %p143, %p144
      %p146 = scmp.ne.s32.totalorder %s137, %s138
      %p147 = scmp.eq.s32.totalorder %s22, 0
      %p148 = por %p146, %p147
      %p149 = scmp.ne.s32.totalorder %s137, %s138
      %p150 = scmp.eq.s32.totalorder %s23, 3
      %p151 = por %p149, %p150
      %p153 = scmp.ne.s32.totalorder %s138, %s152
      %p154 = scmp.eq.s32.totalorder %s23, 0
      %p155 = por %p153, %p154
      %s157 = sadd.s32 %s156, 1
      %p160 = scmp.eq.s32.totalorder %s17, 3
      %p161 = scmp.ne.s32.totalorder %s156, %s158
      %p162 = scmp.eq.s32.totalorder %s17, 0
      %p163 = por %p161, %p162
      %p164 = scmp.ne.s32.totalorder %s156, %s158
      %p165 = scmp.eq.s32.totalorder %s22, 3
      %p166 = por %p164, %p165
      %p167 = scmp.ne.s32.totalorder %s158, %s159
      %p168 = scmp.eq.s32.totalorder %s22, 0
      %p169 = por %p167, %p168
      %p170 = scmp.ne.s32.totalorder %s158, %s159
      %p171 = scmp.eq.s32.totalorder %s23, 3
      %p172 = por %p170, %p171
      %p174 = scmp.ne.s32.totalorder %s159, %s173
      %p175 = scmp.eq.s32.totalorder %s23, 0
      %p176 = por %p174, %p175
      %s178 = sadd.s32 %s177, 1
      %p181 = scmp.eq.s32.totalorder %s17, 3
      %p182 = scmp.ne.s32.totalorder %s177, %s179
      %p183 = scmp.eq.s32.totalorder %s17, 0
      %p184 = por %p182, %p183
      %p185 = scmp.ne.s32.totalorder %s177, %s179
      %p186 = scmp.eq.s32.totalorder %s22, 3
      %p187 = por %p185, %p186
      %p188 = scmp.ne.s32.totalorder %s179, %s180
      %p189 = scmp.eq.s32.totalorder %s22, 0
      %p190 = por %p188, %p189
      %p191 = scmp.ne.s32.totalorder %s179, %s180
      %p192 = scmp.eq.s32.totalorder %s23, 3
      %p193 = por %p191, %p192
      %p195 = scmp.ne.s32.totalorder %s180, %s194
      %p196 = scmp.eq.s32.totalorder %s23, 0
      %p197 = por %p195, %p196
      %s199 = sadd.s32 %s198, 1
      %p202 = scmp.eq.s32.totalorder %s17, 3
      %p203 = scmp.ne.s32.totalorder %s198, %s200
      %p204 = scmp.eq.s32.totalorder %s17, 0
      %p205 = por %p203, %p204
      %p206 = scmp.ne.s32.totalorder %s198, %s200
      %p207 = scmp.eq.s32.totalorder %s22, 3
      %p208 = por %p206, %p207
      %p209 = scmp.ne.s32.totalorder %s200, %s201
      %p210 = scmp.eq.s32.totalorder %s22, 0
      %p211 = por %p209, %p210
      %p212 = scmp.ne.s32.totalorder %s200, %s201
      %p213 = scmp.eq.s32.totalorder %s23, 3
      %p214 = por %p212, %p213
      %p216 = scmp.ne.s32.totalorder %s201, %s215
      %p217 = scmp.eq.s32.totalorder %s23, 0
      %p218 = por %p216, %p217
      %s219 = ssub.s32 %s24, %s36
      %s220 = ssub.s32 %s25, %s32
      %s221 = sor.u32 %s219, %s220
      %p222 = scmp.eq.s32.totalorder %s221, 0
      %s224 = sadd.s32 %s223, 1
      %s225 = scalar_select %p222, %s223, %s224
      %p228 = pneg %p222
      %p229 = scmp.eq.s32.totalorder %s17, 3
      %p230 = por %p228, %p229
      %p231 = scmp.ne.s32.totalorder %s223, %s226
      %p232 = scmp.eq.s32.totalorder %s17, 0
      %p233 = por %p231, %p232
      %p234 = scmp.ne.s32.totalorder %s223, %s226
      %p235 = scmp.eq.s32.totalorder %s22, 3
      %p236 = por %p234, %p235
      %p237 = scmp.ne.s32.totalorder %s226, %s227
      %p238 = scmp.eq.s32.totalorder %s22, 0
      %p239 = por %p237, %p238
      %p240 = scmp.ne.s32.totalorder %s226, %s227
      %p241 = scmp.eq.s32.totalorder %s23, 3
      %p242 = por %p240, %p241
      %p244 = scmp.ne.s32.totalorder %s227, %s243
      %p245 = scmp.eq.s32.totalorder %s23, 0
      %p246 = por %p244, %p245
      %p247 = scmp.le.s32.totalorder 1, %s17
      %p248 = scmp.lt.s32.totalorder %s17, 5
      %p249 = pnand %p247, %p248
      %p250 = pneg %p249
      // Predicated region
      $region9: #{bottleneck_forward_nhwc.1} parent=5 // pred_check
        _
      $region10: #{bottleneck_forward_nhwc.1} parent=5 // pred_check_branch
        %252 = sbr.rel (%p249) target = $region12
      $region11: #{bottleneck_forward_nhwc.1} parent=5 // pred_region
        %s253 = ssub.s32 %s17, 1
        // Predicated region
        $region13: #{bottleneck_forward_nhwc.1} parent=11 // pred_check
          %p254 = pneg %p106
        $region14: #{bottleneck_forward_nhwc.1} parent=11 // pred_check_branch
          %256 = sbr.rel (%p254) target = $region16
        $region15: #{bottleneck_forward_nhwc.1} parent=11 // pred_region
          _
        $region16: #{bottleneck_forward_nhwc.1} parent=11 // pred_fallthru
          _
        // Predicated region
        $region17: #{bottleneck_forward_nhwc.1} parent=11 // pred_check
          %p257 = pneg %p127
        $region18: #{bottleneck_forward_nhwc.1} parent=11 // pred_check_branch
          %259 = sbr.rel (%p257) target = $region20
        $region19: #{bottleneck_forward_nhwc.1} parent=11 // pred_region
          _
        $region20: #{bottleneck_forward_nhwc.1} parent=11 // pred_fallthru
          _
        // Predicated region
        $region21: #{bottleneck_forward_nhwc.1} parent=11 // pred_check
          %p260 = pneg %p148
        $region22: #{bottleneck_forward_nhwc.1} parent=11 // pred_check_branch
          %262 = sbr.rel (%p260) target = $region24
        $region23: #{bottleneck_forward_nhwc.1} parent=11 // pred_region
          _
        $region24: #{bottleneck_forward_nhwc.1} parent=11 // pred_fallthru
          _
        // Predicated region
        $region25: #{bottleneck_forward_nhwc.1} parent=11 // pred_check
          %p263 = pneg %p169
        $region26: #{bottleneck_forward_nhwc.1} parent=11 // pred_check_branch
          %265 = sbr.rel (%p263) target = $region28
        $region27: #{bottleneck_forward_nhwc.1} parent=11 // pred_region
          _
        $region28: #{bottleneck_forward_nhwc.1} parent=11 // pred_fallthru
          _
        // Predicated region
        $region29: #{bottleneck_forward_nhwc.1} parent=11 // pred_check
          %p266 = pneg %p190
        $region30: #{bottleneck_forward_nhwc.1} parent=11 // pred_check_branch
          %268 = sbr.rel (%p266) target = $region32
        $region31: #{bottleneck_forward_nhwc.1} parent=11 // pred_region
          _
        $region32: #{bottleneck_forward_nhwc.1} parent=11 // pred_fallthru
          _
        // Predicated region
        $region33: #{bottleneck_forward_nhwc.1} parent=11 // pred_check
          %p269 = pneg %p211
        $region34: #{bottleneck_forward_nhwc.1} parent=11 // pred_check_branch
          %271 = sbr.rel (%p269) target = $region36
        $region35: #{bottleneck_forward_nhwc.1} parent=11 // pred_region
          _
        $region36: #{bottleneck_forward_nhwc.1} parent=11 // pred_fallthru
          _
      $region12: #{bottleneck_forward_nhwc.1} parent=5 // pred_fallthru
        _
      %p272 = scmp.lt.s32.totalorder %s17, 4
      // Predicated region
      $region37: #{bottleneck_forward_nhwc.1} parent=5 // pred_check
        %p273 = pneg %p272
      $region38: #{bottleneck_forward_nhwc.1} parent=5 // pred_check_branch
        %275 = sbr.rel (%p273) target = $region40
      $region39: #{bottleneck_forward_nhwc.1} parent=5 // pred_region
        // Predicated region
        $region41: #{bottleneck_forward_nhwc.1} parent=39 // pred_check
          %p276 = pneg %p51
        $region42: #{bottleneck_forward_nhwc.1} parent=39 // pred_check_branch
          %278 = sbr.rel (%p276) target = $region44
        $region43: #{bottleneck_forward_nhwc.1} parent=39 // pred_region
          %s279 = smul.u32 8, %s25
          %p280 = scmp.lt.s32.totalorder %s24, 1
          %s281 = scalar_select %p280, %s24, 1
          %p282 = scmp.lt.s32.totalorder %s279, 15
          %s283 = scalar_select %p282, %s279, 15
          %s284 = smul.addr %s283, 2
          %s285 = smul.addr %s281, 32
          %s286 = sadd.s32 %s284, %s285
          %s287 = smul.addr %s286, 8
          %s288 = scalar_lea.vmem %s0, %s287
          %s289 = smul.u32 8, %s25
        $region44: #{bottleneck_forward_nhwc.1} parent=39 // pred_fallthru
          _
        // Predicated region
        $region45: #{bottleneck_forward_nhwc.1} parent=39 // pred_check
          %p290 = pneg %p79
        $region46: #{bottleneck_forward_nhwc.1} parent=39 // pred_check_branch
          %292 = sbr.rel (%p290) target = $region48
        $region47: #{bottleneck_forward_nhwc.1} parent=39 // pred_region
          %s293 = smul.u32 2, %s25
          %p294 = scmp.lt.s32.totalorder %s24, 1
          %s295 = scalar_select %p294, %s24, 1
          %p296 = scmp.lt.s32.totalorder %s293, 3
          %s297 = scalar_select %p296, %s293, 3
          %s298 = smul.addr %s297, 2
          %s299 = smul.addr %s295, 8
          %s300 = sadd.s32 %s298, %s299
          %s301 = smul.addr %s300, 8
          %s302 = scalar_lea.vmem %s1, %s301
          %s303 = smul.u32 2, %s25
        $region48: #{bottleneck_forward_nhwc.1} parent=39 // pred_fallthru
          _
      $region40: #{bottleneck_forward_nhwc.1} parent=5 // pred_fallthru
        _
      %p304 = scmp.le.s32.totalorder 1, %s17
      %p305 = scmp.lt.s32.totalorder %s17, 5
      %p306 = pnand %p304, %p305
      %p307 = pneg %p306
      // Predicated region
      $region49: #{bottleneck_forward_nhwc.1} parent=5 // pred_check
        _
      $region50: #{bottleneck_forward_nhwc.1} parent=5 // pred_check_branch
        %309 = sbr.rel (%p306) target = $region52
      $region51: #{bottleneck_forward_nhwc.1} parent=5 // pred_region
        %s310 = ssub.s32 %s17, 1
        %s311 = smul.u32 8, %s27
        %p312 = scmp.lt.s32.totalorder %s26, 1
        %s313 = scalar_select %p312, %s26, 1
        %p314 = scmp.lt.s32.totalorder %s311, 15
        %s315 = scalar_select %p314, %s311, 15
        %s316 = smul.addr %s315, 2
        %s317 = smul.addr %s313, 32
        %s318 = sadd.s32 %s316, %s317
        %s319 = smul.addr %s318, 8
        %s320 = scalar_lea.vmem %s0, %s319
        %p321 = pneg %p57
        %p322 = pneg %p54
        %s323 = smul.u32 2, %s27
        %p324 = scmp.lt.s32.totalorder %s26, 1
        %s325 = scalar_select %p324, %s26, 1
        %p326 = scmp.lt.s32.totalorder %s323, 3
        %s327 = scalar_select %p326, %s323, 3
        %s328 = smul.addr %s327, 2
        %s329 = smul.addr %s325, 8
        %s330 = sadd.s32 %s328, %s329
        %s331 = smul.addr %s330, 8
        %s332 = scalar_lea.vmem %s1, %s331
        %p333 = pneg %p85
        %p334 = pneg %p82
        %p335 = pneg %p106
        %p336 = pneg %p103
        %p337 = pneg %p127
        %p338 = pneg %p124
        %p339 = pneg %p148
        %p340 = pneg %p145
        %p341 = pneg %p169
        %p342 = pneg %p166
        %p343 = pneg %p190
        %p344 = pneg %p187
        %p345 = pneg %p211
        %p346 = pneg %p208
        %p347 = pneg %p239
        %p348 = pneg %p236
        %s349 = sand.u32 %s226, 1
        %s350 = scalar_lea.sflag [#allocation4], %s349
        %s351 = sand.u32 %s226, 1
        %s352 = smul.addr %s351, 128
        %s353 = scalar_lea.vmem [#allocation3], %s352
        %s354 = smul.u32 8, %s27
        %p355 = scmp.lt.s32.totalorder %s26, 1
        %s356 = scalar_select %p355, %s26, 1
        %p357 = scmp.lt.s32.totalorder %s354, 15
        %s358 = scalar_select %p357, %s354, 15
        %s359 = smul.addr %s358, 2
        %s360 = smul.addr %s356, 32
        %s361 = sadd.s32 %s359, %s360
        %s362 = smul.addr %s361, 8
        %s363 = scalar_lea.vmem %s0, %s362
        %s364 = smul.u32 8, %s27
        %s365 = smul.u32 2, %s27
        %p366 = scmp.lt.s32.totalorder %s26, 1
        %s367 = scalar_select %p366, %s26, 1
        %p368 = scmp.lt.s32.totalorder %s365, 3
        %s369 = scalar_select %p368, %s365, 3
        %s370 = smul.addr %s369, 2
        %s371 = smul.addr %s367, 8
        %s372 = sadd.s32 %s370, %s371
        %s373 = smul.addr %s372, 8
        %s374 = scalar_lea.vmem %s1, %s373
        %s375 = smul.u32 2, %s27
        %s376 = smul.u32 8, %s27
        %v377 = vld [vmem:[%s363] sm:$0xff]
        %v378 = vld [vmem:[%s363 + $0x8] sm:$0xff]
        %v379 = vld [vmem:[%s363 + $0x10] sm:$0xff]
        %v380 = vld [vmem:[%s363 + $0x18] sm:$0xff]
        %v381 = vld [vmem:[%s363 + $0x20] sm:$0xff]
        %v382 = vld [vmem:[%s363 + $0x28] sm:$0xff]
        %v383 = vld [vmem:[%s363 + $0x30] sm:$0xff]
        %v384 = vld [vmem:[%s363 + $0x38] sm:$0xff]
        %v385 = vld [vmem:[%s363 + $0x40] sm:$0xff]
        %v386 = vld [vmem:[%s363 + $0x48] sm:$0xff]
        %v387 = vld [vmem:[%s363 + $0x50] sm:$0xff]
        %v388 = vld [vmem:[%s363 + $0x58] sm:$0xff]
        %v389 = vld [vmem:[%s363 + $0x60] sm:$0xff]
        %v390 = vld [vmem:[%s363 + $0x68] sm:$0xff]
        %v391 = vld [vmem:[%s363 + $0x70] sm:$0xff]
        %v392 = vld [vmem:[%s363 + $0x78] sm:$0xff]
        %v393 = vld [vmem:[%s2] sm:$0xff]
        %v394 = vld [vmem:[%s2 + $0x8] sm:$0xff]
        %v395 = vld [vmem:[%s3] sm:$0x1]
        %v397 = vlaneseq
        %v398 = vshrl.u32 %v397, 7
        %v399 = vsub.s32 0, %v398
        %v400 = vrot.slane %v395, %v399
        %vm402 = vcmask 130048
        %v404 = vsel %vm402, %v377, 0
        %v407 = vsel %vm402, %v378, 0
        %v410 = vsel %vm402, %v379, 0
        %v413 = vsel %vm402, %v380, 0
        %v416 = vsel %vm402, %v381, 0
        %v419 = vsel %vm402, %v382, 0
        %v422 = vsel %vm402, %v383, 0
        %v425 = vsel %vm402, %v384, 0
        %v428 = vsel %vm402, %v385, 0
        %v431 = vsel %vm402, %v386, 0
        %v434 = vsel %vm402, %v387, 0
        %v437 = vsel %vm402, %v388, 0
        %v440 = vsel %vm402, %v389, 0
        %v443 = vsel %vm402, %v390, 0
        %v446 = vsel %vm402, %v391, 0
        %v449 = vsel %vm402, %v392, 0
        %451 = vmatprep.subr.mxu0 0.0
        %452 = vmatpush1.msra.mxu0 0.0
        %453 = vmatprep.subr.mxu0 0.0
        %454 = vmatpush1.msra.mxu0 0.0
        %455 = vmatprep.subr.mxu0 0.0
        %456 = vmatpush1.msra.mxu0 0.0
        %457 = vmatprep.subr.mxu0 0.0
        %458 = vmatpush1.msra.mxu0 0.0
        %459 = vmatprep.subr.mxu0 0.0
        %460 = vmatpush1.msra.mxu0 0.0
        %461 = vmatprep.subr.mxu0 0.0
        %462 = vmatpush1.msra.mxu0 0.0
        %463 = vmatprep.subr.mxu0 0.0
        %464 = vmatpush1.msra.mxu0 0.0
        %465 = vmatprep.subr.mxu0 0.0
        %466 = vmatpush1.msra.mxu0 0.0
        %467 = vmatprep.subr.mxu0 0.0
        %468 = vmatpush1.msra.mxu0 0.0
        %469 = vmatprep.subr.mxu0 0.0
        %470 = vmatpush1.msra.mxu0 0.0
        %471 = vmatprep.subr.mxu0 0.0
        %472 = vmatpush1.msra.mxu0 0.0
        %473 = vmatprep.subr.mxu0 0.0
        %474 = vmatpush1.msra.mxu0 0.0
        %475 = vmatprep.subr.mxu0 0.0
        %476 = vmatpush1.msra.mxu0 0.0
        %477 = vmatprep.subr.mxu0 0.0
        %478 = vmatpush1.msra.mxu0 0.0
        %479 = vmatprep.subr.mxu0 0.0
        %480 = vmatpush1.msra.mxu0 %v394
        %481 = vmatprep.subr.mxu0 0.0
        %482 = vmatpush1.msra.mxu0 %v393
        %483 = vmatprep.subr.mxu0 0.0
        %484 = vmatpush2.msra.mxu0 0.0
        %485 = vmatprep.subr.mxu0 0.0
        %486 = vmatpush2.msra.mxu0 0.0
        %487 = vmatprep.subr.mxu0 0.0
        %488 = vmatpush2.msra.mxu0 0.0
        %489 = vmatprep.subr.mxu0 0.0
        %490 = vmatpush2.msra.mxu0 0.0
        %491 = vmatprep.subr.mxu0 0.0
        %492 = vmatpush2.msra.mxu0 0.0
        %493 = vmatprep.subr.mxu0 0.0
        %494 = vmatpush2.msra.mxu0 0.0
        %495 = vmatprep.subr.mxu0 0.0
        %496 = vmatpush2.msra.mxu0 0.0
        %497 = vmatprep.subr.mxu0 0.0
        %498 = vmatpush2.msra.mxu0 0.0
        %499 = vmatprep.subr.mxu0 0.0
        %500 = vmatpush2.msra.mxu0 0.0
        %501 = vmatprep.subr.mxu0 0.0
        %502 = vmatpush2.msra.mxu0 0.0
        %503 = vmatprep.subr.mxu0 0.0
        %504 = vmatpush2.msra.mxu0 0.0
        %505 = vmatprep.subr.mxu0 0.0
        %506 = vmatpush2.msra.mxu0 0.0
        %507 = vmatprep.subr.mxu0 0.0
        %508 = vmatpush2.msra.mxu0 0.0
        %509 = vmatprep.subr.mxu0 0.0
        %510 = vmatpush2.msra.mxu0 0.0
        %511 = vmatprep.subr.mxu0 0.0
        %512 = vmatpush2.msra.mxu0 0.0
        %513 = vmatprep.subr.mxu0 0.0
        %514 = vmatpush2.msra.mxu0 0.0
        %515 = vmatprep.mubr.f32.mxu0 0.0
        %516 = vmatmul.mubr.f32.gmra.mxu0 %v404
        %v517 = vpop.f32.mrf.mxu0
        %v518 = vadd.f32 %v400, %v517
        %v519 = vpop.f32.mrf.mxu0
        %520 = vmatprep.mubr.f32.mxu0 0.0
        %521 = vmatmul.mubr.f32.gmra.mxu0 %v407
        %v522 = vpop.f32.mrf.mxu0
        %v523 = vadd.f32 %v400, %v522
        %v524 = vpop.f32.mrf.mxu0
        %525 = vmatprep.mubr.f32.mxu0 0.0
        %526 = vmatmul.mubr.f32.gmra.mxu0 %v410
        %v527 = vpop.f32.mrf.mxu0
        %v528 = vadd.f32 %v400, %v527
        %v529 = vpop.f32.mrf.mxu0
        %530 = vmatprep.mubr.f32.mxu0 0.0
        %531 = vmatmul.mubr.f32.gmra.mxu0 %v413
        %v532 = vpop.f32.mrf.mxu0
        %v533 = vadd.f32 %v400, %v532
        %v534 = vpop.f32.mrf.mxu0
        %535 = vmatprep.mubr.f32.mxu0 0.0
        %536 = vmatmul.mubr.f32.gmra.mxu0 %v416
        %v537 = vpop.f32.mrf.mxu0
        %v538 = vadd.f32 %v400, %v537
        %v539 = vpop.f32.mrf.mxu0
        %540 = vmatprep.mubr.f32.mxu0 0.0
        %541 = vmatmul.mubr.f32.gmra.mxu0 %v419
        %v542 = vpop.f32.mrf.mxu0
        %v543 = vadd.f32 %v400, %v542
        %v544 = vpop.f32.mrf.mxu0
        %545 = vmatprep.mubr.f32.mxu0 0.0
        %546 = vmatmul.mubr.f32.gmra.mxu0 %v422
        %v547 = vpop.f32.mrf.mxu0
        %v548 = vadd.f32 %v400, %v547
        %v549 = vpop.f32.mrf.mxu0
        %550 = vmatprep.mubr.f32.mxu0 0.0
        %551 = vmatmul.mubr.f32.gmra.mxu0 %v425
        %v552 = vpop.f32.mrf.mxu0
        %v553 = vadd.f32 %v400, %v552
        %v554 = vpop.f32.mrf.mxu0
        %555 = vmatprep.mubr.f32.mxu0 0.0
        %556 = vmatmul.mubr.f32.gmra.mxu0 %v428
        %v557 = vpop.f32.mrf.mxu0
        %v558 = vadd.f32 %v400, %v557
        %v559 = vpop.f32.mrf.mxu0
        %560 = vmatprep.mubr.f32.mxu0 0.0
        %561 = vmatmul.mubr.f32.gmra.mxu0 %v431
        %v562 = vpop.f32.mrf.mxu0
        %v563 = vadd.f32 %v400, %v562
        %v564 = vpop.f32.mrf.mxu0
        %565 = vmatprep.mubr.f32.mxu0 0.0
        %566 = vmatmul.mubr.f32.gmra.mxu0 %v434
        %v567 = vpop.f32.mrf.mxu0
        %v568 = vadd.f32 %v400, %v567
        %v569 = vpop.f32.mrf.mxu0
        %570 = vmatprep.mubr.f32.mxu0 0.0
        %571 = vmatmul.mubr.f32.gmra.mxu0 %v437
        %v572 = vpop.f32.mrf.mxu0
        %v573 = vadd.f32 %v400, %v572
        %v574 = vpop.f32.mrf.mxu0
        %575 = vmatprep.mubr.f32.mxu0 0.0
        %576 = vmatmul.mubr.f32.gmra.mxu0 %v440
        %v577 = vpop.f32.mrf.mxu0
        %v578 = vadd.f32 %v400, %v577
        %v579 = vpop.f32.mrf.mxu0
        %580 = vmatprep.mubr.f32.mxu0 0.0
        %581 = vmatmul.mubr.f32.gmra.mxu0 %v443
        %v582 = vpop.f32.mrf.mxu0
        %v583 = vadd.f32 %v400, %v582
        %v584 = vpop.f32.mrf.mxu0
        %585 = vmatprep.mubr.f32.mxu0 0.0
        %586 = vmatmul.mubr.f32.gmra.mxu0 %v446
        %v587 = vpop.f32.mrf.mxu0
        %v588 = vadd.f32 %v400, %v587
        %v589 = vpop.f32.mrf.mxu0
        %590 = vmatprep.mubr.f32.mxu0 0.0
        %591 = vmatmul.mubr.f32.gmra.mxu0 %v449
        %v592 = vpop.f32.mrf.mxu0
        %v593 = vadd.f32 %v400, %v592
        %v594 = vpop.f32.mrf.mxu0
        %595 = vdwg.mxu0
        %v596 = vmax.f32 %v518, 0.0
        %v597 = vmax.f32 %v523, 0.0
        %v598 = vmax.f32 %v528, 0.0
        %v599 = vmax.f32 %v533, 0.0
        %v600 = vmax.f32 %v538, 0.0
        %v601 = vmax.f32 %v543, 0.0
        %v602 = vmax.f32 %v548, 0.0
        %v603 = vmax.f32 %v553, 0.0
        %v604 = vmax.f32 %v558, 0.0
        %v605 = vmax.f32 %v563, 0.0
        %v606 = vmax.f32 %v568, 0.0
        %v607 = vmax.f32 %v573, 0.0
        %v608 = vmax.f32 %v578, 0.0
        %v609 = vmax.f32 %v583, 0.0
        %v610 = vmax.f32 %v588, 0.0
        %v611 = vmax.f32 %v593, 0.0
        %s612 = scalar_lea.vmem [#allocation2], 16
        %vm613 = vcmask 31744
        %614 = vst.msk [vmem:[%s612] sm:$0xff] %vm613, %v596
        %615 = vst.msk [vmem:[%s612 + $0x8] sm:$0xff] %vm613, %v597
        %616 = vst.msk [vmem:[%s612 + $0x10] sm:$0xff] %vm613, %v598
        %617 = vst.msk [vmem:[%s612 + $0x18] sm:$0xff] %vm613, %v599
        %618 = vst.msk [vmem:[%s612 + $0x20] sm:$0xff] %vm613, %v600
        %619 = vst.msk [vmem:[%s612 + $0x28] sm:$0xff] %vm613, %v601
        %620 = vst.msk [vmem:[%s612 + $0x30] sm:$0xff] %vm613, %v602
        %621 = vst.msk [vmem:[%s612 + $0x38] sm:$0xff] %vm613, %v603
        %622 = vst.msk [vmem:[%s612 + $0x40] sm:$0xff] %vm613, %v604
        %623 = vst.msk [vmem:[%s612 + $0x48] sm:$0xff] %vm613, %v605
        %624 = vst.msk [vmem:[%s612 + $0x50] sm:$0xff] %vm613, %v606
        %625 = vst.msk [vmem:[%s612 + $0x58] sm:$0xff] %vm613, %v607
        %626 = vst.msk [vmem:[%s612 + $0x60] sm:$0xff] %vm613, %v608
        %627 = vst.msk [vmem:[%s612 + $0x68] sm:$0xff] %vm613, %v609
        %628 = vst.msk [vmem:[%s612 + $0x70] sm:$0xff] %vm613, %v610
        %629 = vst.msk [vmem:[%s612 + $0x78] sm:$0xff] %vm613, %v611
        %v630 = vld [vmem:[%s374] sm:$0xff]
        %v631 = vld [vmem:[%s374 + $0x8] sm:$0xff]
        %v632 = vld [vmem:[%s374 + $0x10] sm:$0xff]
        %v633 = vld [vmem:[%s374 + $0x18] sm:$0xff]
        %v634 = vld [vmem:[%s2] sm:$0xff]
        %v635 = vld [vmem:[%s2 + $0x8] sm:$0xff]
        %v636 = vld [vmem:[%s3] sm:$0x1]
        %v638 = vlaneseq
        %v639 = vshrl.u32 %v638, 7
        %v640 = vsub.s32 0, %v639
        %v641 = vrot.slane %v636, %v640
        %v644 = vsel %vm402, %v630, 0
        %v647 = vsel %vm402, %v631, 0
        %v650 = vsel %vm402, %v632, 0
        %v653 = vsel %vm402, %v633, 0
        %655 = vmatprep.subr.mxu0 0.0
        %656 = vmatpush1.msra.mxu0 0.0
        %657 = vmatprep.subr.mxu0 0.0
        %658 = vmatpush1.msra.mxu0 0.0
        %659 = vmatprep.subr.mxu0 0.0
        %660 = vmatpush1.msra.mxu0 0.0
        %661 = vmatprep.subr.mxu0 0.0
        %662 = vmatpush1.msra.mxu0 0.0
        %663 = vmatprep.subr.mxu0 0.0
        %664 = vmatpush1.msra.mxu0 0.0
        %665 = vmatprep.subr.mxu0 0.0
        %666 = vmatpush1.msra.mxu0 0.0
        %667 = vmatprep.subr.mxu0 0.0
        %668 = vmatpush1.msra.mxu0 0.0
        %669 = vmatprep.subr.mxu0 0.0
        %670 = vmatpush1.msra.mxu0 0.0
        %671 = vmatprep.subr.mxu0 0.0
        %672 = vmatpush1.msra.mxu0 0.0
        %673 = vmatprep.subr.mxu0 0.0
        %674 = vmatpush1.msra.mxu0 0.0
        %675 = vmatprep.subr.mxu0 0.0
        %676 = vmatpush1.msra.mxu0 0.0
        %677 = vmatprep.subr.mxu0 0.0
        %678 = vmatpush1.msra.mxu0 0.0
        %679 = vmatprep.subr.mxu0 0.0
        %680 = vmatpush1.msra.mxu0 0.0
        %681 = vmatprep.subr.mxu0 0.0
        %682 = vmatpush1.msra.mxu0 0.0
        %683 = vmatprep.subr.mxu0 0.0
        %684 = vmatpush1.msra.mxu0 %v635
        %685 = vmatprep.subr.mxu0 0.0
        %686 = vmatpush1.msra.mxu0 %v634
        %687 = vmatprep.subr.mxu0 0.0
        %688 = vmatpush2.msra.mxu0 0.0
        %689 = vmatprep.subr.mxu0 0.0
        %690 = vmatpush2.msra.mxu0 0.0
        %691 = vmatprep.subr.mxu0 0.0
        %692 = vmatpush2.msra.mxu0 0.0
        %693 = vmatprep.subr.mxu0 0.0
        %694 = vmatpush2.msra.mxu0 0.0
        %695 = vmatprep.subr.mxu0 0.0
        %696 = vmatpush2.msra.mxu0 0.0
        %697 = vmatprep.subr.mxu0 0.0
        %698 = vmatpush2.msra.mxu0 0.0
        %699 = vmatprep.subr.mxu0 0.0
        %700 = vmatpush2.msra.mxu0 0.0
        %701 = vmatprep.subr.mxu0 0.0
        %702 = vmatpush2.msra.mxu0 0.0
        %703 = vmatprep.subr.mxu0 0.0
        %704 = vmatpush2.msra.mxu0 0.0
        %705 = vmatprep.subr.mxu0 0.0
        %706 = vmatpush2.msra.mxu0 0.0
        %707 = vmatprep.subr.mxu0 0.0
        %708 = vmatpush2.msra.mxu0 0.0
        %709 = vmatprep.subr.mxu0 0.0
        %710 = vmatpush2.msra.mxu0 0.0
        %711 = vmatprep.subr.mxu0 0.0
        %712 = vmatpush2.msra.mxu0 0.0
        %713 = vmatprep.subr.mxu0 0.0
        %714 = vmatpush2.msra.mxu0 0.0
        %715 = vmatprep.subr.mxu0 0.0
        %716 = vmatpush2.msra.mxu0 0.0
        %717 = vmatprep.subr.mxu0 0.0
        %718 = vmatpush2.msra.mxu0 0.0
        %719 = vmatprep.mubr.f32.mxu0 0.0
        %720 = vmatmul.mubr.f32.gmra.mxu0 %v644
        %v721 = vpop.f32.mrf.mxu0
        %v722 = vadd.f32 %v641, %v721
        %v723 = vpop.f32.mrf.mxu0
        %724 = vmatprep.mubr.f32.mxu0 0.0
        %725 = vmatmul.mubr.f32.gmra.mxu0 %v647
        %v726 = vpop.f32.mrf.mxu0
        %v727 = vadd.f32 %v641, %v726
        %v728 = vpop.f32.mrf.mxu0
        %729 = vmatprep.mubr.f32.mxu0 0.0
        %730 = vmatmul.mubr.f32.gmra.mxu0 %v650
        %v731 = vpop.f32.mrf.mxu0
        %v732 = vadd.f32 %v641, %v731
        %v733 = vpop.f32.mrf.mxu0
        %734 = vmatprep.mubr.f32.mxu0 0.0
        %735 = vmatmul.mubr.f32.gmra.mxu0 %v653
        %v736 = vpop.f32.mrf.mxu0
        %v737 = vadd.f32 %v641, %v736
        %v738 = vpop.f32.mrf.mxu0
        %739 = vdwg.mxu0
        %v740 = vmax.f32 %v722, 0.0
        %v741 = vmax.f32 %v727, 0.0
        %v742 = vmax.f32 %v732, 0.0
        %v743 = vmax.f32 %v737, 0.0
        %p744 = scmp.eq.s32.totalorder %s27, 0
        %s745 = scalar_select %p744, 0.0, 1.0
        %p746 = scmp.eq.s32.totalorder %s27, 1
        %s747 = scalar_select %p746, 0.0, 1.0
        %v748 = vstv %s745
        %v749 = vmul.f32 %v740, %v748
        %v750 = vmul.f32 %v741, %v748
        %751 = vst.msk [vmem:[#allocation2] sm:$0xff] %vm613, %v749
        %752 = vst.msk [vmem:[#allocation2 + $0x8] sm:$0xff] %vm613, %v750
        %v753 = vstv %s747
        %v754 = vmul.f32 %v742, %v753
        %v755 = vmul.f32 %v743, %v753
        %s756 = scalar_lea.vmem [#allocation2], 144
        %757 = vst.msk [vmem:[%s756] sm:$0xff] %vm613, %v754
        %758 = vst.msk [vmem:[%s756 + $0x8] sm:$0xff] %vm613, %v755
        %v759 = vld [vmem:[#allocation2] sm:$0xff]
        %v760 = vld [vmem:[#allocation2 + $0x8] sm:$0xff]
        %v761 = vld [vmem:[#allocation2 + $0x10] sm:$0xff]
        %v762 = vld [vmem:[#allocation2 + $0x18] sm:$0xff]
        %v763 = vld [vmem:[#allocation2 + $0x20] sm:$0xff]
        %v764 = vld [vmem:[#allocation2 + $0x28] sm:$0xff]
        %v765 = vld [vmem:[#allocation2 + $0x30] sm:$0xff]
        %v766 = vld [vmem:[#allocation2 + $0x38] sm:$0xff]
        %v767 = vld [vmem:[#allocation2 + $0x40] sm:$0xff]
        %v768 = vld [vmem:[#allocation2 + $0x48] sm:$0xff]
        %v769 = vld [vmem:[#allocation2 + $0x50] sm:$0xff]
        %v770 = vld [vmem:[#allocation2 + $0x58] sm:$0xff]
        %v771 = vld [vmem:[#allocation2 + $0x60] sm:$0xff]
        %v772 = vld [vmem:[#allocation2 + $0x68] sm:$0xff]
        %v773 = vld [vmem:[#allocation2 + $0x70] sm:$0xff]
        %v774 = vld [vmem:[#allocation2 + $0x78] sm:$0xff]
        %v775 = vld [vmem:[#allocation2 + $0x80] sm:$0xff]
        %v776 = vld [vmem:[#allocation2 + $0x88] sm:$0xff]
        %v777 = vld [vmem:[#allocation2 + $0x90] sm:$0xff]
        %v778 = vld [vmem:[#allocation2 + $0x98] sm:$0xff]
        %v779 = vlaneseq
        %v780 = vshrl.u32 %v779, 7
        %v781 = vadd.s32 %v780, 8
        %vm782 = vcmp.gt.s32.totalorder %v780, 0
        %vm783 = vcmp.gt.s32.totalorder %v781, 0
        %v784 = vsel %vm782, 1, 0
        %v785 = vsel %vm783, 1, 0
        %v786 = vcvt.s32.f32 %v784
        %v787 = vcvt.s32.f32 %v785
        %vm788 = vcmp.lt.s32.totalorder %v780, 15
        %vm789 = vcmp.lt.s32.totalorder %v781, 15
        %v790 = vsel %vm788, 1, 0
        %v791 = vsel %vm789, 1, 0
        %v792 = vcvt.s32.f32 %v790
        %v793 = vcvt.s32.f32 %v791
        %v794 = vrot.slane %v759, 7
        %v795 = vrot.slane %v761, 7
        %v796 = vrot.slane %v763, 7
        %v797 = vrot.slane %v765, 7
        %v798 = vrot.slane %v767, 7
        %v799 = vrot.slane %v769, 7
        %v800 = vrot.slane %v771, 7
        %v801 = vrot.slane %v773, 7
        %v802 = vrot.slane %v775, 7
        %v803 = vrot.slane %v777, 7
        %v804 = vrot.slane %v760, 7
        %v805 = vrot.slane %v762, 7
        %v806 = vrot.slane %v764, 7
        %v807 = vrot.slane %v766, 7
        %v808 = vrot.slane %v768, 7
        %v809 = vrot.slane %v770, 7
        %v810 = vrot.slane %v772, 7
        %v811 = vrot.slane %v774, 7
        %v812 = vrot.slane %v776, 7
        %v813 = vrot.slane %v778, 7
        %vm814 = vcmp.lt.s32.totalorder %v780, 1
        %v815 = vsel %vm814, %v794, %v804
        %v816 = vsel %vm814, %v795, %v805
        %v817 = vsel %vm814, %v796, %v806
        %v818 = vsel %vm814, %v797, %v807
        %v819 = vsel %vm814, %v798, %v808
        %v820 = vsel %vm814, %v799, %v809
        %v821 = vsel %vm814, %v800, %v810
        %v822 = vsel %vm814, %v801, %v811
        %v823 = vsel %vm814, %v802, %v812
        %v824 = vsel %vm814, %v803, %v813
        %v825 = vsel %vm814, %v804, %v794
        %v826 = vsel %vm814, %v805, %v795
        %v827 = vsel %vm814, %v806, %v796
        %v828 = vsel %vm814, %v807, %v797
        %v829 = vsel %vm814, %v808, %v798
        %v830 = vsel %vm814, %v809, %v799
        %v831 = vsel %vm814, %v810, %v800
        %v832 = vsel %vm814, %v811, %v801
        %v833 = vsel %vm814, %v812, %v802
        %v834 = vsel %vm814, %v813, %v803
        %v835 = vmul.f32 %v825, %v786
        %v836 = vmul.f32 %v815, %v787
        %v837 = vmul.f32 %v826, %v786
        %v838 = vmul.f32 %v816, %v787
        %v839 = vmul.f32 %v827, %v786
        %v840 = vmul.f32 %v817, %v787
        %v841 = vmul.f32 %v828, %v786
        %v842 = vmul.f32 %v818, %v787
        %v843 = vmul.f32 %v829, %v786
        %v844 = vmul.f32 %v819, %v787
        %v845 = vmul.f32 %v830, %v786
        %v846 = vmul.f32 %v820, %v787
        %v847 = vmul.f32 %v831, %v786
        %v848 = vmul.f32 %v821, %v787
        %v849 = vmul.f32 %v832, %v786
        %v850 = vmul.f32 %v822, %v787
        %v851 = vmul.f32 %v833, %v786
        %v852 = vmul.f32 %v823, %v787
        %v853 = vmul.f32 %v834, %v786
        %v854 = vmul.f32 %v824, %v787
        %v855 = vrot.slane %v759, 1
        %v856 = vrot.slane %v761, 1
        %v857 = vrot.slane %v763, 1
        %v858 = vrot.slane %v765, 1
        %v859 = vrot.slane %v767, 1
        %v860 = vrot.slane %v769, 1
        %v861 = vrot.slane %v771, 1
        %v862 = vrot.slane %v773, 1
        %v863 = vrot.slane %v775, 1
        %v864 = vrot.slane %v777, 1
        %v865 = vrot.slane %v760, 1
        %v866 = vrot.slane %v762, 1
        %v867 = vrot.slane %v764, 1
        %v868 = vrot.slane %v766, 1
        %v869 = vrot.slane %v768, 1
        %v870 = vrot.slane %v770, 1
        %v871 = vrot.slane %v772, 1
        %v872 = vrot.slane %v774, 1
        %v873 = vrot.slane %v776, 1
        %v874 = vrot.slane %v778, 1
        %vm875 = vcmp.lt.s32.totalorder %v780, 7
        %v876 = vsel %vm875, %v855, %v865
        %v877 = vsel %vm875, %v856, %v866
        %v878 = vsel %vm875, %v857, %v867
        %v879 = vsel %vm875, %v858, %v868
        %v880 = vsel %vm875, %v859, %v869
        %v881 = vsel %vm875, %v860, %v870
        %v882 = vsel %vm875, %v861, %v871
        %v883 = vsel %vm875, %v862, %v872
        %v884 = vsel %vm875, %v863, %v873
        %v885 = vsel %vm875, %v864, %v874
        %v886 = vsel %vm875, %v865, %v855
        %v887 = vsel %vm875, %v866, %v856
        %v888 = vsel %vm875, %v867, %v857
        %v889 = vsel %vm875, %v868, %v858
        %v890 = vsel %vm875, %v869, %v859
        %v891 = vsel %vm875, %v870, %v860
        %v892 = vsel %vm875, %v871, %v861
        %v893 = vsel %vm875, %v872, %v862
        %v894 = vsel %vm875, %v873, %v863
        %v895 = vsel %vm875, %v874, %v864
        %v896 = vmul.f32 %v876, %v792
        %v897 = vmul.f32 %v886, %v793
        %v898 = vmul.f32 %v877, %v792
        %v899 = vmul.f32 %v887, %v793
        %v900 = vmul.f32 %v878, %v792
        %v901 = vmul.f32 %v888, %v793
        %v902 = vmul.f32 %v879, %v792
        %v903 = vmul.f32 %v889, %v793
        %v904 = vmul.f32 %v880, %v792
        %v905 = vmul.f32 %v890, %v793
        %v906 = vmul.f32 %v881, %v792
        %v907 = vmul.f32 %v891, %v793
        %v908 = vmul.f32 %v882, %v792
        %v909 = vmul.f32 %v892, %v793
        %v910 = vmul.f32 %v883, %v792
        %v911 = vmul.f32 %v893, %v793
        %v912 = vmul.f32 %v884, %v792
        %v913 = vmul.f32 %v894, %v793
        %v914 = vmul.f32 %v885, %v792
        %v915 = vmul.f32 %v895, %v793
        %936 = vrot.lane.b32.xlu0 %v759, 4
        %v937 = vpop.permute.xlu0 %936
        %938 = vrot.lane.b32.xlu0 %v760, 4
        %v939 = vpop.permute.xlu0 %938
        %940 = vrot.lane.b32.xlu0 %v761, 4
        %v941 = vpop.permute.xlu0 %940
        %942 = vrot.lane.b32.xlu0 %v762, 4
        %v943 = vpop.permute.xlu0 %942
        %944 = vrot.lane.b32.xlu0 %v763, 4
        %v945 = vpop.permute.xlu0 %944
        %946 = vrot.lane.b32.xlu0 %v764, 4
        %v947 = vpop.permute.xlu0 %946
        %948 = vrot.lane.b32.xlu0 %v765, 4
        %v949 = vpop.permute.xlu0 %948
        %950 = vrot.lane.b32.xlu0 %v766, 4
        %v951 = vpop.permute.xlu0 %950
        %952 = vrot.lane.b32.xlu0 %v767, 4
        %v953 = vpop.permute.xlu0 %952
        %954 = vrot.lane.b32.xlu0 %v768, 4
        %v955 = vpop.permute.xlu0 %954
        %956 = vrot.lane.b32.xlu0 %v769, 4
        %v957 = vpop.permute.xlu0 %956
        %958 = vrot.lane.b32.xlu0 %v770, 4
        %v959 = vpop.permute.xlu0 %958
        %960 = vrot.lane.b32.xlu0 %v771, 4
        %v961 = vpop.permute.xlu0 %960
        %962 = vrot.lane.b32.xlu0 %v772, 4
        %v963 = vpop.permute.xlu0 %962
        %964 = vrot.lane.b32.xlu0 %v773, 4
        %v965 = vpop.permute.xlu0 %964
        %966 = vrot.lane.b32.xlu0 %v774, 4
        %v967 = vpop.permute.xlu0 %966
        %968 = vrot.lane.b32.xlu0 %v775, 4
        %v969 = vpop.permute.xlu0 %968
        %970 = vrot.lane.b32.xlu0 %v776, 4
        %v971 = vpop.permute.xlu0 %970
        %972 = vrot.lane.b32.xlu0 %v777, 4
        %v973 = vpop.permute.xlu0 %972
        %974 = vrot.lane.b32.xlu0 %v778, 4
        %v975 = vpop.permute.xlu0 %974
        %1016 = vrot.lane.b32.xlu0 %v896, 8
        %v1017 = vpop.permute.xlu0 %1016
        %1018 = vrot.lane.b32.xlu0 %v897, 8
        %v1019 = vpop.permute.xlu0 %1018
        %1020 = vrot.lane.b32.xlu0 %v898, 8
        %v1021 = vpop.permute.xlu0 %1020
        %1022 = vrot.lane.b32.xlu0 %v899, 8
        %v1023 = vpop.permute.xlu0 %1022
        %1024 = vrot.lane.b32.xlu0 %v900, 8
        %v1025 = vpop.permute.xlu0 %1024
        %1026 = vrot.lane.b32.xlu0 %v901, 8
        %v1027 = vpop.permute.xlu0 %1026
        %1028 = vrot.lane.b32.xlu0 %v902, 8
        %v1029 = vpop.permute.xlu0 %1028
        %1030 = vrot.lane.b32.xlu0 %v903, 8
        %v1031 = vpop.permute.xlu0 %1030
        %1032 = vrot.lane.b32.xlu0 %v904, 8
        %v1033 = vpop.permute.xlu0 %1032
        %1034 = vrot.lane.b32.xlu0 %v905, 8
        %v1035 = vpop.permute.xlu0 %1034
        %1036 = vrot.lane.b32.xlu0 %v906, 8
        %v1037 = vpop.permute.xlu0 %1036
        %1038 = vrot.lane.b32.xlu0 %v907, 8
        %v1039 = vpop.permute.xlu0 %1038
        %1040 = vrot.lane.b32.xlu0 %v908, 8
        %v1041 = vpop.permute.xlu0 %1040
        %1042 = vrot.lane.b32.xlu0 %v909, 8
        %v1043 = vpop.permute.xlu0 %1042
        %1044 = vrot.lane.b32.xlu0 %v910, 8
        %v1045 = vpop.permute.xlu0 %1044
        %1046 = vrot.lane.b32.xlu0 %v911, 8
        %v1047 = vpop.permute.xlu0 %1046
        %1048 = vrot.lane.b32.xlu0 %v912, 8
        %v1049 = vpop.permute.xlu0 %1048
        %1050 = vrot.lane.b32.xlu0 %v913, 8
        %v1051 = vpop.permute.xlu0 %1050
        %1052 = vrot.lane.b32.xlu0 %v914, 8
        %v1053 = vpop.permute.xlu0 %1052
        %1054 = vrot.lane.b32.xlu0 %v915, 8
        %v1055 = vpop.permute.xlu0 %1054
        %v1076 = vsel %vm613, %v835, %v937
        %v1077 = vsel %vm613, %v836, %v939
        %v1078 = vsel %vm613, %v837, %v941
        %v1079 = vsel %vm613, %v838, %v943
        %v1080 = vsel %vm613, %v839, %v945
        %v1081 = vsel %vm613, %v840, %v947
        %v1082 = vsel %vm613, %v841, %v949
        %v1083 = vsel %vm613, %v842, %v951
        %v1084 = vsel %vm613, %v843, %v953
        %v1085 = vsel %vm613, %v844, %v955
        %v1086 = vsel %vm613, %v845, %v957
        %v1087 = vsel %vm613, %v846, %v959
        %v1088 = vsel %vm613, %v847, %v961
        %v1089 = vsel %vm613, %v848, %v963
        %v1090 = vsel %vm613, %v849, %v965
        %v1091 = vsel %vm613, %v850, %v967
        %v1092 = vsel %vm613, %v851, %v969
        %v1093 = vsel %vm613, %v852, %v971
        %v1094 = vsel %vm613, %v853, %v973
        %v1095 = vsel %vm613, %v854, %v975
        %vm1096 = vcmask 64512
        %v1097 = vsel %vm1096, %v1076, %v1017
        %v1098 = vsel %vm1096, %v1077, %v1019
        %v1099 = vsel %vm1096, %v1078, %v1021
        %v1100 = vsel %vm1096, %v1079, %v1023
        %v1101 = vsel %vm1096, %v1080, %v1025
        %v1102 = vsel %vm1096, %v1081, %v1027
        %v1103 = vsel %vm1096, %v1082, %v1029
        %v1104 = vsel %vm1096, %v1083, %v1031
        %v1105 = vsel %vm1096, %v1084, %v1033
        %v1106 = vsel %vm1096, %v1085, %v1035
        %v1107 = vsel %vm1096, %v1086, %v1037
        %v1108 = vsel %vm1096, %v1087, %v1039
        %v1109 = vsel %vm1096, %v1088, %v1041
        %v1110 = vsel %vm1096, %v1089, %v1043
        %v1111 = vsel %vm1096, %v1090, %v1045
        %v1112 = vsel %vm1096, %v1091, %v1047
        %v1113 = vsel %vm1096, %v1092, %v1049
        %v1114 = vsel %vm1096, %v1093, %v1051
        %v1115 = vsel %vm1096, %v1094, %v1053
        %v1116 = vsel %vm1096, %v1095, %v1055
        %1133 = vrot.lane.b32.xlu0 %v1099, 12
        %v1134 = vpop.permute.xlu0 %1133
        %1135 = vrot.lane.b32.xlu0 %v1100, 12
        %v1136 = vpop.permute.xlu0 %1135
        %1137 = vrot.lane.b32.xlu0 %v1101, 12
        %v1138 = vpop.permute.xlu0 %1137
        %1139 = vrot.lane.b32.xlu0 %v1102, 12
        %v1140 = vpop.permute.xlu0 %1139
        %1141 = vrot.lane.b32.xlu0 %v1103, 12
        %v1142 = vpop.permute.xlu0 %1141
        %1143 = vrot.lane.b32.xlu0 %v1104, 12
        %v1144 = vpop.permute.xlu0 %1143
        %1145 = vrot.lane.b32.xlu0 %v1105, 12
        %v1146 = vpop.permute.xlu0 %1145
        %1147 = vrot.lane.b32.xlu0 %v1106, 12
        %v1148 = vpop.permute.xlu0 %1147
        %1149 = vrot.lane.b32.xlu0 %v1107, 12
        %v1150 = vpop.permute.xlu0 %1149
        %1151 = vrot.lane.b32.xlu0 %v1108, 12
        %v1152 = vpop.permute.xlu0 %1151
        %1153 = vrot.lane.b32.xlu0 %v1109, 12
        %v1154 = vpop.permute.xlu0 %1153
        %1155 = vrot.lane.b32.xlu0 %v1110, 12
        %v1156 = vpop.permute.xlu0 %1155
        %1157 = vrot.lane.b32.xlu0 %v1111, 12
        %v1158 = vpop.permute.xlu0 %1157
        %1159 = vrot.lane.b32.xlu0 %v1112, 12
        %v1160 = vpop.permute.xlu0 %1159
        %1161 = vrot.lane.b32.xlu0 %v1113, 12
        %v1162 = vpop.permute.xlu0 %1161
        %1163 = vrot.lane.b32.xlu0 %v1114, 12
        %v1164 = vpop.permute.xlu0 %1163
        %1183 = vrot.lane.b32.xlu0 %v1101, 24
        %v1184 = vpop.permute.xlu0 %1183
        %1185 = vrot.lane.b32.xlu0 %v1102, 24
        %v1186 = vpop.permute.xlu0 %1185
        %1187 = vrot.lane.b32.xlu0 %v1103, 24
        %v1188 = vpop.permute.xlu0 %1187
        %1189 = vrot.lane.b32.xlu0 %v1104, 24
        %v1190 = vpop.permute.xlu0 %1189
        %1191 = vrot.lane.b32.xlu0 %v1105, 24
        %v1192 = vpop.permute.xlu0 %1191
        %1193 = vrot.lane.b32.xlu0 %v1106, 24
        %v1194 = vpop.permute.xlu0 %1193
        %1195 = vrot.lane.b32.xlu0 %v1107, 24
        %v1196 = vpop.permute.xlu0 %1195
        %1197 = vrot.lane.b32.xlu0 %v1108, 24
        %v1198 = vpop.permute.xlu0 %1197
        %1199 = vrot.lane.b32.xlu0 %v1109, 24
        %v1200 = vpop.permute.xlu0 %1199
        %1201 = vrot.lane.b32.xlu0 %v1110, 24
        %v1202 = vpop.permute.xlu0 %1201
        %1203 = vrot.lane.b32.xlu0 %v1111, 24
        %v1204 = vpop.permute.xlu0 %1203
        %1205 = vrot.lane.b32.xlu0 %v1112, 24
        %v1206 = vpop.permute.xlu0 %1205
        %1207 = vrot.lane.b32.xlu0 %v1113, 24
        %v1208 = vpop.permute.xlu0 %1207
        %1209 = vrot.lane.b32.xlu0 %v1114, 24
        %v1210 = vpop.permute.xlu0 %1209
        %1211 = vrot.lane.b32.xlu0 %v1115, 24
        %v1212 = vpop.permute.xlu0 %1211
        %1213 = vrot.lane.b32.xlu0 %v1116, 24
        %v1214 = vpop.permute.xlu0 %1213
        %vm1231 = vcmask 97280
        %v1232 = vsel %vm1231, %v1097, %v1134
        %v1233 = vsel %vm1231, %v1098, %v1136
        %v1234 = vsel %vm1231, %v1099, %v1138
        %v1235 = vsel %vm1231, %v1100, %v1140
        %v1236 = vsel %vm1231, %v1101, %v1142
        %v1237 = vsel %vm1231, %v1102, %v1144
        %v1238 = vsel %vm1231, %v1103, %v1146
        %v1239 = vsel %vm1231, %v1104, %v1148
        %v1240 = vsel %vm1231, %v1105, %v1150
        %v1241 = vsel %vm1231, %v1106, %v1152
        %v1242 = vsel %vm1231, %v1107, %v1154
        %v1243 = vsel %vm1231, %v1108, %v1156
        %v1244 = vsel %vm1231, %v1109, %v1158
        %v1245 = vsel %vm1231, %v1110, %v1160
        %v1246 = vsel %vm1231, %v1111, %v1162
        %v1247 = vsel %vm1231, %v1112, %v1164
        %vm1248 = vcmask 195584
        %v1249 = vsel %vm1248, %v1232, %v1184
        %v1250 = vsel %vm1248, %v1233, %v1186
        %v1251 = vsel %vm1248, %v1234, %v1188
        %v1252 = vsel %vm1248, %v1235, %v1190
        %v1253 = vsel %vm1248, %v1236, %v1192
        %v1254 = vsel %vm1248, %v1237, %v1194
        %v1255 = vsel %vm1248, %v1238, %v1196
        %v1256 = vsel %vm1248, %v1239, %v1198
        %v1257 = vsel %vm1248, %v1240, %v1200
        %v1258 = vsel %vm1248, %v1241, %v1202
        %v1259 = vsel %vm1248, %v1242, %v1204
        %v1260 = vsel %vm1248, %v1243, %v1206
        %v1261 = vsel %vm1248, %v1244, %v1208
        %v1262 = vsel %vm1248, %v1245, %v1210
        %v1263 = vsel %vm1248, %v1246, %v1212
        %v1264 = vsel %vm1248, %v1247, %v1214
        %v1265 = vld [vmem:[%s4] sm:$0xff]
        %v1266 = vld [vmem:[%s4 + $0x8] sm:$0xff]
        %v1267 = vld [vmem:[%s4 + $0x10] sm:$0xff]
        %v1268 = vld [vmem:[%s4 + $0x18] sm:$0xff]
        %v1269 = vld [vmem:[%s4 + $0x20] sm:$0xf]
        %v1270 = vld [vmem:[%s5] sm:$0x1]
        %v1272 = vlaneseq
        %v1273 = vshrl.u32 %v1272, 7
        %v1274 = vsub.s32 0, %v1273
        %v1275 = vrot.slane %v1270, %v1274
        %vm1277 = vcmask 293888
        %v1279 = vsel %vm1277, %v1249, 0
        %v1282 = vsel %vm1277, %v1250, 0
        %v1285 = vsel %vm1277, %v1251, 0
        %v1288 = vsel %vm1277, %v1252, 0
        %v1291 = vsel %vm1277, %v1253, 0
        %v1294 = vsel %vm1277, %v1254, 0
        %v1297 = vsel %vm1277, %v1255, 0
        %v1300 = vsel %vm1277, %v1256, 0
        %v1303 = vsel %vm1277, %v1257, 0
        %v1306 = vsel %vm1277, %v1258, 0
        %v1309 = vsel %vm1277, %v1259, 0
        %v1312 = vsel %vm1277, %v1260, 0
        %v1315 = vsel %vm1277, %v1261, 0
        %v1318 = vsel %vm1277, %v1262, 0
        %v1321 = vsel %vm1277, %v1263, 0
        %v1324 = vsel %vm1277, %v1264, 0
        %vm1326 = vcmask 1043456
        %v1328 = vsel %vm1326, %v1269, 0
        %1330 = vmatprep.subr.mxu0 0.0
        %1331 = vmatpush1.msra.mxu0 0.0
        %1332 = vmatprep.subr.mxu0 0.0
        %1333 = vmatpush1.msra.mxu0 0.0
        %1334 = vmatprep.subr.mxu0 0.0
        %1335 = vmatpush1.msra.mxu0 0.0
        %1336 = vmatprep.subr.mxu0 0.0
        %1337 = vmatpush1.msra.mxu0 0.0
        %1338 = vmatprep.subr.mxu0 0.0
        %1339 = vmatpush1.msra.mxu0 0.0
        %1340 = vmatprep.subr.mxu0 0.0
        %1341 = vmatpush1.msra.mxu0 0.0
        %1342 = vmatprep.subr.mxu0 0.0
        %1343 = vmatpush1.msra.mxu0 0.0
        %1344 = vmatprep.subr.mxu0 0.0
        %1345 = vmatpush1.msra.mxu0 0.0
        %1346 = vmatprep.subr.mxu0 0.0
        %1347 = vmatpush1.msra.mxu0 0.0
        %1348 = vmatprep.subr.mxu0 0.0
        %1349 = vmatpush1.msra.mxu0 0.0
        %1350 = vmatprep.subr.mxu0 0.0
        %1351 = vmatpush1.msra.mxu0 0.0
        %1352 = vmatprep.subr.mxu0 0.0
        %1353 = vmatpush1.msra.mxu0 %v1328
        %1354 = vmatprep.subr.mxu0 0.0
        %1355 = vmatpush1.msra.mxu0 %v1268
        %1356 = vmatprep.subr.mxu0 0.0
        %1357 = vmatpush1.msra.mxu0 %v1267
        %1358 = vmatprep.subr.mxu0 0.0
        %1359 = vmatpush1.msra.mxu0 %v1266
        %1360 = vmatprep.subr.mxu0 0.0
        %1361 = vmatpush1.msra.mxu0 %v1265
        %1362 = vmatprep.subr.mxu0 0.0
        %1363 = vmatpush2.msra.mxu0 0.0
        %1364 = vmatprep.subr.mxu0 0.0
        %1365 = vmatpush2.msra.mxu0 0.0
        %1366 = vmatprep.subr.mxu0 0.0
        %1367 = vmatpush2.msra.mxu0 0.0
        %1368 = vmatprep.subr.mxu0 0.0
        %1369 = vmatpush2.msra.mxu0 0.0
        %1370 = vmatprep.subr.mxu0 0.0
        %1371 = vmatpush2.msra.mxu0 0.0
        %1372 = vmatprep.subr.mxu0 0.0
        %1373 = vmatpush2.msra.mxu0 0.0
        %1374 = vmatprep.subr.mxu0 0.0
        %1375 = vmatpush2.msra.mxu0 0.0
        %1376 = vmatprep.subr.mxu0 0.0
        %1377 = vmatpush2.msra.mxu0 0.0
        %1378 = vmatprep.subr.mxu0 0.0
        %1379 = vmatpush2.msra.mxu0 0.0
        %1380 = vmatprep.subr.mxu0 0.0
        %1381 = vmatpush2.msra.mxu0 0.0
        %1382 = vmatprep.subr.mxu0 0.0
        %1383 = vmatpush2.msra.mxu0 0.0
        %1384 = vmatprep.subr.mxu0 0.0
        %1385 = vmatpush2.msra.mxu0 0.0
        %1386 = vmatprep.subr.mxu0 0.0
        %1387 = vmatpush2.msra.mxu0 0.0
        %1388 = vmatprep.subr.mxu0 0.0
        %1389 = vmatpush2.msra.mxu0 0.0
        %1390 = vmatprep.subr.mxu0 0.0
        %1391 = vmatpush2.msra.mxu0 0.0
        %1392 = vmatprep.subr.mxu0 0.0
        %1393 = vmatpush2.msra.mxu0 0.0
        %1394 = vmatprep.mubr.f32.mxu0 0.0
        %1395 = vmatmul.mubr.f32.gmra.mxu0 %v1279
        %v1396 = vpop.f32.mrf.mxu0
        %v1397 = vadd.f32 %v1275, %v1396
        %v1398 = vpop.f32.mrf.mxu0
        %1399 = vmatprep.mubr.f32.mxu0 0.0
        %1400 = vmatmul.mubr.f32.gmra.mxu0 %v1282
        %v1401 = vpop.f32.mrf.mxu0
        %v1402 = vadd.f32 %v1275, %v1401
        %v1403 = vpop.f32.mrf.mxu0
        %1404 = vmatprep.mubr.f32.mxu0 0.0
        %1405 = vmatmul.mubr.f32.gmra.mxu0 %v1285
        %v1406 = vpop.f32.mrf.mxu0
        %v1407 = vadd.f32 %v1275, %v1406
        %v1408 = vpop.f32.mrf.mxu0
        %1409 = vmatprep.mubr.f32.mxu0 0.0
        %1410 = vmatmul.mubr.f32.gmra.mxu0 %v1288
        %v1411 = vpop.f32.mrf.mxu0
        %v1412 = vadd.f32 %v1275, %v1411
        %v1413 = vpop.f32.mrf.mxu0
        %1414 = vmatprep.mubr.f32.mxu0 0.0
        %1415 = vmatmul.mubr.f32.gmra.mxu0 %v1291
        %v1416 = vpop.f32.mrf.mxu0
        %v1417 = vadd.f32 %v1275, %v1416
        %v1418 = vpop.f32.mrf.mxu0
        %1419 = vmatprep.mubr.f32.mxu0 0.0
        %1420 = vmatmul.mubr.f32.gmra.mxu0 %v1294
        %v1421 = vpop.f32.mrf.mxu0
        %v1422 = vadd.f32 %v1275, %v1421
        %v1423 = vpop.f32.mrf.mxu0
        %1424 = vmatprep.mubr.f32.mxu0 0.0
        %1425 = vmatmul.mubr.f32.gmra.mxu0 %v1297
        %v1426 = vpop.f32.mrf.mxu0
        %v1427 = vadd.f32 %v1275, %v1426
        %v1428 = vpop.f32.mrf.mxu0
        %1429 = vmatprep.mubr.f32.mxu0 0.0
        %1430 = vmatmul.mubr.f32.gmra.mxu0 %v1300
        %v1431 = vpop.f32.mrf.mxu0
        %v1432 = vadd.f32 %v1275, %v1431
        %v1433 = vpop.f32.mrf.mxu0
        %1434 = vmatprep.mubr.f32.mxu0 0.0
        %1435 = vmatmul.mubr.f32.gmra.mxu0 %v1303
        %v1436 = vpop.f32.mrf.mxu0
        %v1437 = vadd.f32 %v1275, %v1436
        %v1438 = vpop.f32.mrf.mxu0
        %1439 = vmatprep.mubr.f32.mxu0 0.0
        %1440 = vmatmul.mubr.f32.gmra.mxu0 %v1306
        %v1441 = vpop.f32.mrf.mxu0
        %v1442 = vadd.f32 %v1275, %v1441
        %v1443 = vpop.f32.mrf.mxu0
        %1444 = vmatprep.mubr.f32.mxu0 0.0
        %1445 = vmatmul.mubr.f32.gmra.mxu0 %v1309
        %v1446 = vpop.f32.mrf.mxu0
        %v1447 = vadd.f32 %v1275, %v1446
        %v1448 = vpop.f32.mrf.mxu0
        %1449 = vmatprep.mubr.f32.mxu0 0.0
        %1450 = vmatmul.mubr.f32.gmra.mxu0 %v1312
        %v1451 = vpop.f32.mrf.mxu0
        %v1452 = vadd.f32 %v1275, %v1451
        %v1453 = vpop.f32.mrf.mxu0
        %1454 = vmatprep.mubr.f32.mxu0 0.0
        %1455 = vmatmul.mubr.f32.gmra.mxu0 %v1315
        %v1456 = vpop.f32.mrf.mxu0
        %v1457 = vadd.f32 %v1275, %v1456
        %v1458 = vpop.f32.mrf.mxu0
        %1459 = vmatprep.mubr.f32.mxu0 0.0
        %1460 = vmatmul.mubr.f32.gmra.mxu0 %v1318
        %v1461 = vpop.f32.mrf.mxu0
        %v1462 = vadd.f32 %v1275, %v1461
        %v1463 = vpop.f32.mrf.mxu0
        %1464 = vmatprep.mubr.f32.mxu0 0.0
        %1465 = vmatmul.mubr.f32.gmra.mxu0 %v1321
        %v1466 = vpop.f32.mrf.mxu0
        %v1467 = vadd.f32 %v1275, %v1466
        %v1468 = vpop.f32.mrf.mxu0
        %1469 = vmatprep.mubr.f32.mxu0 0.0
        %1470 = vmatmul.mubr.f32.gmra.mxu0 %v1324
        %v1471 = vpop.f32.mrf.mxu0
        %v1472 = vadd.f32 %v1275, %v1471
        %v1473 = vpop.f32.mrf.mxu0
        %1474 = vdwg.mxu0
        %v1475 = vmax.f32 %v1397, 0.0
        %v1476 = vmax.f32 %v1402, 0.0
        %v1477 = vmax.f32 %v1407, 0.0
        %v1478 = vmax.f32 %v1412, 0.0
        %v1479 = vmax.f32 %v1417, 0.0
        %v1480 = vmax.f32 %v1422, 0.0
        %v1481 = vmax.f32 %v1427, 0.0
        %v1482 = vmax.f32 %v1432, 0.0
        %v1483 = vmax.f32 %v1437, 0.0
        %v1484 = vmax.f32 %v1442, 0.0
        %v1485 = vmax.f32 %v1447, 0.0
        %v1486 = vmax.f32 %v1452, 0.0
        %v1487 = vmax.f32 %v1457, 0.0
        %v1488 = vmax.f32 %v1462, 0.0
        %v1489 = vmax.f32 %v1467, 0.0
        %v1490 = vmax.f32 %v1472, 0.0
        %v1491 = vld [vmem:[%s6] sm:$0xf]
        %v1492 = vld [vmem:[%s7] sm:$0x1]
        %v1494 = vlaneseq
        %v1495 = vshrl.u32 %v1494, 7
        %v1496 = vsub.s32 0, %v1495
        %v1497 = vrot.slane %v1492, %v1496
        %v1500 = vsel %vm613, %v1475, 0
        %v1503 = vsel %vm613, %v1476, 0
        %v1506 = vsel %vm613, %v1477, 0
        %v1509 = vsel %vm613, %v1478, 0
        %v1512 = vsel %vm613, %v1479, 0
        %v1515 = vsel %vm613, %v1480, 0
        %v1518 = vsel %vm613, %v1481, 0
        %v1521 = vsel %vm613, %v1482, 0
        %v1524 = vsel %vm613, %v1483, 0
        %v1527 = vsel %vm613, %v1484, 0
        %v1530 = vsel %vm613, %v1485, 0
        %v1533 = vsel %vm613, %v1486, 0
        %v1536 = vsel %vm613, %v1487, 0
        %v1539 = vsel %vm613, %v1488, 0
        %v1542 = vsel %vm613, %v1489, 0
        %v1545 = vsel %vm613, %v1490, 0
        %v1548 = vsel %vm1326, %v1491, 0
        %1550 = vmatprep.subr.mxu0 0.0
        %1551 = vmatpush1.msra.mxu0 0.0
        %1552 = vmatprep.subr.mxu0 0.0
        %1553 = vmatpush1.msra.mxu0 0.0
        %1554 = vmatprep.subr.mxu0 0.0
        %1555 = vmatpush1.msra.mxu0 0.0
        %1556 = vmatprep.subr.mxu0 0.0
        %1557 = vmatpush1.msra.mxu0 0.0
        %1558 = vmatprep.subr.mxu0 0.0
        %1559 = vmatpush1.msra.mxu0 0.0
        %1560 = vmatprep.subr.mxu0 0.0
        %1561 = vmatpush1.msra.mxu0 0.0
        %1562 = vmatprep.subr.mxu0 0.0
        %1563 = vmatpush1.msra.mxu0 0.0
        %1564 = vmatprep.subr.mxu0 0.0
        %1565 = vmatpush1.msra.mxu0 0.0
        %1566 = vmatprep.subr.mxu0 0.0
        %1567 = vmatpush1.msra.mxu0 0.0
        %1568 = vmatprep.subr.mxu0 0.0
        %1569 = vmatpush1.msra.mxu0 0.0
        %1570 = vmatprep.subr.mxu0 0.0
        %1571 = vmatpush1.msra.mxu0 0.0
        %1572 = vmatprep.subr.mxu0 0.0
        %1573 = vmatpush1.msra.mxu0 0.0
        %1574 = vmatprep.subr.mxu0 0.0
        %1575 = vmatpush1.msra.mxu0 0.0
        %1576 = vmatprep.subr.mxu0 0.0
        %1577 = vmatpush1.msra.mxu0 0.0
        %1578 = vmatprep.subr.mxu0 0.0
        %1579 = vmatpush1.msra.mxu0 0.0
        %1580 = vmatprep.subr.mxu0 0.0
        %1581 = vmatpush1.msra.mxu0 %v1548
        %1582 = vmatprep.subr.mxu0 0.0
        %1583 = vmatpush2.msra.mxu0 0.0
        %1584 = vmatprep.subr.mxu0 0.0
        %1585 = vmatpush2.msra.mxu0 0.0
        %1586 = vmatprep.subr.mxu0 0.0
        %1587 = vmatpush2.msra.mxu0 0.0
        %1588 = vmatprep.subr.mxu0 0.0
        %1589 = vmatpush2.msra.mxu0 0.0
        %1590 = vmatprep.subr.mxu0 0.0
        %1591 = vmatpush2.msra.mxu0 0.0
        %1592 = vmatprep.subr.mxu0 0.0
        %1593 = vmatpush2.msra.mxu0 0.0
        %1594 = vmatprep.subr.mxu0 0.0
        %1595 = vmatpush2.msra.mxu0 0.0
        %1596 = vmatprep.subr.mxu0 0.0
        %1597 = vmatpush2.msra.mxu0 0.0
        %1598 = vmatprep.subr.mxu0 0.0
        %1599 = vmatpush2.msra.mxu0 0.0
        %1600 = vmatprep.subr.mxu0 0.0
        %1601 = vmatpush2.msra.mxu0 0.0
        %1602 = vmatprep.subr.mxu0 0.0
        %1603 = vmatpush2.msra.mxu0 0.0
        %1604 = vmatprep.subr.mxu0 0.0
        %1605 = vmatpush2.msra.mxu0 0.0
        %1606 = vmatprep.subr.mxu0 0.0
        %1607 = vmatpush2.msra.mxu0 0.0
        %1608 = vmatprep.subr.mxu0 0.0
        %1609 = vmatpush2.msra.mxu0 0.0
        %1610 = vmatprep.subr.mxu0 0.0
        %1611 = vmatpush2.msra.mxu0 0.0
        %1612 = vmatprep.subr.mxu0 0.0
        %1613 = vmatpush2.msra.mxu0 0.0
        %1614 = vmatprep.mubr.f32.mxu0 0.0
        %1615 = vmatmul.mubr.f32.gmra.mxu0 %v1500
        %v1616 = vpop.f32.mrf.mxu0
        %v1617 = vadd.f32 %v1497, %v1616
        %v1618 = vpop.f32.mrf.mxu0
        %1619 = vmatprep.mubr.f32.mxu0 0.0
        %1620 = vmatmul.mubr.f32.gmra.mxu0 %v1503
        %v1621 = vpop.f32.mrf.mxu0
        %v1622 = vadd.f32 %v1497, %v1621
        %v1623 = vpop.f32.mrf.mxu0
        %1624 = vmatprep.mubr.f32.mxu0 0.0
        %1625 = vmatmul.mubr.f32.gmra.mxu0 %v1506
        %v1626 = vpop.f32.mrf.mxu0
        %v1627 = vadd.f32 %v1497, %v1626
        %v1628 = vpop.f32.mrf.mxu0
        %1629 = vmatprep.mubr.f32.mxu0 0.0
        %1630 = vmatmul.mubr.f32.gmra.mxu0 %v1509
        %v1631 = vpop.f32.mrf.mxu0
        %v1632 = vadd.f32 %v1497, %v1631
        %v1633 = vpop.f32.mrf.mxu0
        %1634 = vmatprep.mubr.f32.mxu0 0.0
        %1635 = vmatmul.mubr.f32.gmra.mxu0 %v1512
        %v1636 = vpop.f32.mrf.mxu0
        %v1637 = vadd.f32 %v1497, %v1636
        %v1638 = vpop.f32.mrf.mxu0
        %1639 = vmatprep.mubr.f32.mxu0 0.0
        %1640 = vmatmul.mubr.f32.gmra.mxu0 %v1515
        %v1641 = vpop.f32.mrf.mxu0
        %v1642 = vadd.f32 %v1497, %v1641
        %v1643 = vpop.f32.mrf.mxu0
        %1644 = vmatprep.mubr.f32.mxu0 0.0
        %1645 = vmatmul.mubr.f32.gmra.mxu0 %v1518
        %v1646 = vpop.f32.mrf.mxu0
        %v1647 = vadd.f32 %v1497, %v1646
        %v1648 = vpop.f32.mrf.mxu0
        %1649 = vmatprep.mubr.f32.mxu0 0.0
        %1650 = vmatmul.mubr.f32.gmra.mxu0 %v1521
        %v1651 = vpop.f32.mrf.mxu0
        %v1652 = vadd.f32 %v1497, %v1651
        %v1653 = vpop.f32.mrf.mxu0
        %1654 = vmatprep.mubr.f32.mxu0 0.0
        %1655 = vmatmul.mubr.f32.gmra.mxu0 %v1524
        %v1656 = vpop.f32.mrf.mxu0
        %v1657 = vadd.f32 %v1497, %v1656
        %v1658 = vpop.f32.mrf.mxu0
        %1659 = vmatprep.mubr.f32.mxu0 0.0
        %1660 = vmatmul.mubr.f32.gmra.mxu0 %v1527
        %v1661 = vpop.f32.mrf.mxu0
        %v1662 = vadd.f32 %v1497, %v1661
        %v1663 = vpop.f32.mrf.mxu0
        %1664 = vmatprep.mubr.f32.mxu0 0.0
        %1665 = vmatmul.mubr.f32.gmra.mxu0 %v1530
        %v1666 = vpop.f32.mrf.mxu0
        %v1667 = vadd.f32 %v1497, %v1666
        %v1668 = vpop.f32.mrf.mxu0
        %1669 = vmatprep.mubr.f32.mxu0 0.0
        %1670 = vmatmul.mubr.f32.gmra.mxu0 %v1533
        %v1671 = vpop.f32.mrf.mxu0
        %v1672 = vadd.f32 %v1497, %v1671
        %v1673 = vpop.f32.mrf.mxu0
        %1674 = vmatprep.mubr.f32.mxu0 0.0
        %1675 = vmatmul.mubr.f32.gmra.mxu0 %v1536
        %v1676 = vpop.f32.mrf.mxu0
        %v1677 = vadd.f32 %v1497, %v1676
        %v1678 = vpop.f32.mrf.mxu0
        %1679 = vmatprep.mubr.f32.mxu0 0.0
        %1680 = vmatmul.mubr.f32.gmra.mxu0 %v1539
        %v1681 = vpop.f32.mrf.mxu0
        %v1682 = vadd.f32 %v1497, %v1681
        %v1683 = vpop.f32.mrf.mxu0
        %1684 = vmatprep.mubr.f32.mxu0 0.0
        %1685 = vmatmul.mubr.f32.gmra.mxu0 %v1542
        %v1686 = vpop.f32.mrf.mxu0
        %v1687 = vadd.f32 %v1497, %v1686
        %v1688 = vpop.f32.mrf.mxu0
        %1689 = vmatprep.mubr.f32.mxu0 0.0
        %1690 = vmatmul.mubr.f32.gmra.mxu0 %v1545
        %v1691 = vpop.f32.mrf.mxu0
        %v1692 = vadd.f32 %v1497, %v1691
        %v1693 = vpop.f32.mrf.mxu0
        %1694 = vdwg.mxu0
        %v1695 = vld [vmem:[%s363] sm:$0xff]
        %v1696 = vld [vmem:[%s363 + $0x8] sm:$0xff]
        %v1697 = vld [vmem:[%s363 + $0x10] sm:$0xff]
        %v1698 = vld [vmem:[%s363 + $0x18] sm:$0xff]
        %v1699 = vld [vmem:[%s363 + $0x20] sm:$0xff]
        %v1700 = vld [vmem:[%s363 + $0x28] sm:$0xff]
        %v1701 = vld [vmem:[%s363 + $0x30] sm:$0xff]
        %v1702 = vld [vmem:[%s363 + $0x38] sm:$0xff]
        %v1703 = vld [vmem:[%s363 + $0x40] sm:$0xff]
        %v1704 = vld [vmem:[%s363 + $0x48] sm:$0xff]
        %v1705 = vld [vmem:[%s363 + $0x50] sm:$0xff]
        %v1706 = vld [vmem:[%s363 + $0x58] sm:$0xff]
        %v1707 = vld [vmem:[%s363 + $0x60] sm:$0xff]
        %v1708 = vld [vmem:[%s363 + $0x68] sm:$0xff]
        %v1709 = vld [vmem:[%s363 + $0x70] sm:$0xff]
        %v1710 = vld [vmem:[%s363 + $0x78] sm:$0xff]
        %v1711 = vadd.f32 %v1617, %v1695
        %v1712 = vadd.f32 %v1622, %v1696
        %v1713 = vadd.f32 %v1627, %v1697
        %v1714 = vadd.f32 %v1632, %v1698
        %v1715 = vadd.f32 %v1637, %v1699
        %v1716 = vadd.f32 %v1642, %v1700
        %v1717 = vadd.f32 %v1647, %v1701
        %v1718 = vadd.f32 %v1652, %v1702
        %v1719 = vadd.f32 %v1657, %v1703
        %v1720 = vadd.f32 %v1662, %v1704
        %v1721 = vadd.f32 %v1667, %v1705
        %v1722 = vadd.f32 %v1672, %v1706
        %v1723 = vadd.f32 %v1677, %v1707
        %v1724 = vadd.f32 %v1682, %v1708
        %v1725 = vadd.f32 %v1687, %v1709
        %v1726 = vadd.f32 %v1692, %v1710
        %v1727 = vmax.f32 %v1711, 0.0
        %v1728 = vmax.f32 %v1712, 0.0
        %v1729 = vmax.f32 %v1713, 0.0
        %v1730 = vmax.f32 %v1714, 0.0
        %v1731 = vmax.f32 %v1715, 0.0
        %v1732 = vmax.f32 %v1716, 0.0
        %v1733 = vmax.f32 %v1717, 0.0
        %v1734 = vmax.f32 %v1718, 0.0
        %v1735 = vmax.f32 %v1719, 0.0
        %v1736 = vmax.f32 %v1720, 0.0
        %v1737 = vmax.f32 %v1721, 0.0
        %v1738 = vmax.f32 %v1722, 0.0
        %v1739 = vmax.f32 %v1723, 0.0
        %v1740 = vmax.f32 %v1724, 0.0
        %v1741 = vmax.f32 %v1725, 0.0
        %v1742 = vmax.f32 %v1726, 0.0
        %1743 = vst.msk [vmem:[%s353] sm:$0xff] %vm402, %v1727
        %1744 = vst.msk [vmem:[%s353 + $0x8] sm:$0xff] %vm402, %v1728
        %1745 = vst.msk [vmem:[%s353 + $0x10] sm:$0xff] %vm402, %v1729
        %1746 = vst.msk [vmem:[%s353 + $0x18] sm:$0xff] %vm402, %v1730
        %1747 = vst.msk [vmem:[%s353 + $0x20] sm:$0xff] %vm402, %v1731
        %1748 = vst.msk [vmem:[%s353 + $0x28] sm:$0xff] %vm402, %v1732
        %1749 = vst.msk [vmem:[%s353 + $0x30] sm:$0xff] %vm402, %v1733
        %1750 = vst.msk [vmem:[%s353 + $0x38] sm:$0xff] %vm402, %v1734
        %1751 = vst.msk [vmem:[%s353 + $0x40] sm:$0xff] %vm402, %v1735
        %1752 = vst.msk [vmem:[%s353 + $0x48] sm:$0xff] %vm402, %v1736
        %1753 = vst.msk [vmem:[%s353 + $0x50] sm:$0xff] %vm402, %v1737
        %1754 = vst.msk [vmem:[%s353 + $0x58] sm:$0xff] %vm402, %v1738
        %1755 = vst.msk [vmem:[%s353 + $0x60] sm:$0xff] %vm402, %v1739
        %1756 = vst.msk [vmem:[%s353 + $0x68] sm:$0xff] %vm402, %v1740
        %1757 = vst.msk [vmem:[%s353 + $0x70] sm:$0xff] %vm402, %v1741
        %1758 = vst.msk [vmem:[%s353 + $0x78] sm:$0xff] %vm402, %v1742
        %s1759 = sand.u32 %s226, 1
        %s1760 = scalar_lea.sflag [#allocation4], %s1759
        %s1761 = sand.u32 %s226, 1
        %s1762 = smul.addr %s1761, 128
        %s1763 = scalar_lea.vmem [#allocation3], %s1762
        // Predicated region
        $region53: #{bottleneck_forward_nhwc.1} parent=51 // pred_check
          %p1764 = pneg %p236
        $region54: #{bottleneck_forward_nhwc.1} parent=51 // pred_check_branch
          %1766 = sbr.rel (%p1764) target = $region56
        $region55: #{bottleneck_forward_nhwc.1} parent=51 // pred_region
          %s1767 = smul.u32 8, %s27
          %s1769 = ssub.s32 2048, 2048
          %1770 = vsyncadd %s1760, %s1769
          %s1771 = smul.addr %s1767, 2
          %s1772 = smul.addr %s26, 32
          %s1773 = sadd.s32 %s1771, %s1772
          %s1774 = smul.addr %s1773, 128
          %s1775 = scalar_lea.hbm %s8, %s1774
          %s1776 = sshll.u32 %s1763, 4
          %s1777 = int_to_ptr.vmem [resolvable:$true] %s1776
          %1782 = dma.vmem_to_hbm [thread:$0]  %s1777, 2048, %s1775, %s1760, 128, 128, 8
        $region56: #{bottleneck_forward_nhwc.1} parent=51 // pred_fallthru
          _
      $region52: #{bottleneck_forward_nhwc.1} parent=5 // pred_fallthru
        _
      %p1783 = scmp.le.s32.totalorder 2, %s17
      // Predicated region
      $region57: #{bottleneck_forward_nhwc.1} parent=5 // pred_check
        %p1784 = pneg %p1783
      $region58: #{bottleneck_forward_nhwc.1} parent=5 // pred_check_branch
        %1786 = sbr.rel (%p1784) target = $region60
      $region59: #{bottleneck_forward_nhwc.1} parent=5 // pred_region
        %s1787 = ssub.s32 %s17, 2
        // Predicated region
        $region61: #{bottleneck_forward_nhwc.1} parent=59 // pred_check
          %p1788 = pneg %p242
        $region62: #{bottleneck_forward_nhwc.1} parent=59 // pred_check_branch
          %1790 = sbr.rel (%p1788) target = $region64
        $region63: #{bottleneck_forward_nhwc.1} parent=59 // pred_region
          %s1791 = sand.u32 %s227, 1
          %s1792 = scalar_lea.sflag [#allocation4], %s1791
          %s1793 = sand.u32 %s227, 1
          %s1794 = smul.addr %s1793, 128
          %s1795 = scalar_lea.vmem [#allocation3], %s1794
          %1796 = dma.done %s1792, 2048
        $region64: #{bottleneck_forward_nhwc.1} parent=59 // pred_fallthru
          _
      $region60: #{bottleneck_forward_nhwc.1} parent=5 // pred_fallthru
        _
    $region6: #{bottleneck_forward_nhwc.1} parent=1 // loop_footer
      %s21 = sadd.s32 1, %s17
    $region7: #{bottleneck_forward_nhwc.1} parent=1 // loop_footer_branch
      %16 = sbr.rel target = $region3
    $region8: #{bottleneck_forward_nhwc.1} parent=1 // loop_exit
      _
    %1797 = vsyncpa [#allocation4], 1
    %s1798 = scalar_lea.sflag [#allocation4], 1
    %1799 = vsyncpa %s1798, 1

</llo_original>
